<compile_context>
chip_gen: v7x
topology: tpu7x:2x2x1
jax: 0.10.0
libtpu: 0.0.40
codegen_flags: <defaults>
</compile_context>

<pallas_src>
import functools

import jax
import jax.numpy as jnp
from jax import lax
from jax.experimental import pallas as pl
from jax.experimental.pallas import tpu as pltpu


def _dwsep_kernel(x_ref, dw_ref, pw_ref, o_ref, *, K: int):
    """Fused depthwise KxK ('same' pad, stride 1) + pointwise 1x1 for one image."""
    P = K // 2
    _, H, W, Cin = x_ref.shape
    Cout = o_ref.shape[3]

    x = x_ref[0].astype(jnp.float32)             # (H, W, Cin)
    dw = dw_ref[...].astype(jnp.float32)         # (K*K, Cin), taps row-major (kh, kw)

    # Zero-pad along H only (leading axis => tile-granular concat, aligned reads).
    zpad = jnp.zeros((P, W, Cin), jnp.float32)
    xp = jnp.concatenate([zpad, x, zpad], axis=0)            # (H + 2P, W, Cin)

    # Horizontal-boundary validity masks, hoisted out of the tap loop.
    w_iota = lax.broadcasted_iota(jnp.int32, (H, W, Cin), 1)
    w_valid = {
        dc: jnp.logical_and(w_iota + dc >= 0, w_iota + dc < W)
        for dc in range(-P, P + 1) if dc != 0
    }

    # Depthwise KxK: register accumulator, first tap initialises (no zeros pass).
    acc = None
    for kh in range(K):
        xh = xp[kh:kh + H]                       # (H, W, Cin) full-width aligned slice
        for kw in range(K):
            dc = kw - P
            if dc == 0:
                shifted = xh
            else:
                shifted = pltpu.roll(xh, shift=(-dc) % W, axis=1)   # XLU sublane roll
                shifted = jnp.where(w_valid[dc], shifted, 0.0)      # zero the wrap
            idx = kh * K + kw
            tap = dw[idx:idx + 1, :].reshape(1, 1, Cin)
            term = shifted * tap
            acc = term if acc is None else acc + term

    # Pointwise 1x1 conv == channel matmul on the MXU (bf16 in, f32 accumulate).
    lhs = acc.reshape(H * W, Cin).astype(jnp.bfloat16)
    rhs = pw_ref[...].astype(jnp.bfloat16)                          # (Cin, Cout)
    y = jnp.dot(lhs, rhs, preferred_element_type=jnp.float32)       # (H*W, Cout)

    o_ref[...] = y.reshape(1, H, W, Cout).astype(o_ref.dtype)


def dwsep_conv2d_nhwc(x_nhwc, dw_w, pw_w, *, kernel_size=3):
    """x: (N,H,W,Cin); dw_w: (K*K, Cin); pw_w: (Cin, Cout).  Returns (N,H,W,Cout)."""
    N, H, W, Cin = x_nhwc.shape
    K = kernel_size
    Cout = pw_w.shape[1]
    assert K % 2 == 1, "odd kernel_size only"
    assert dw_w.shape == (K * K, Cin)
    assert pw_w.shape == (Cin, Cout)

    flops = 2 * N * H * W * Cin * (K * K + Cout)
    bytes_accessed = 4 * (x_nhwc.size + dw_w.size + pw_w.size + N * H * W * Cout)

    return pl.pallas_call(
        functools.partial(_dwsep_kernel, K=K),
        out_shape=jax.ShapeDtypeStruct((N, H, W, Cout), x_nhwc.dtype),
        grid_spec=pltpu.PrefetchScalarGridSpec(
            num_scalar_prefetch=0,
            grid=(N,),
            in_specs=[
                pl.BlockSpec((1, H, W, Cin), lambda n: (n, 0, 0, 0)),
                pl.BlockSpec((K * K, Cin), lambda n: (0, 0)),   # weights: fetched once
                pl.BlockSpec((Cin, Cout), lambda n: (0, 0)),    # weights: fetched once
            ],
            out_specs=pl.BlockSpec((1, H, W, Cout), lambda n: (n, 0, 0, 0)),
        ),
        compiler_params=pltpu.CompilerParams(
            dimension_semantics=("parallel",)),                 # both TCs on v7x
        cost_estimate=pl.CostEstimate(
            flops=flops, transcendentals=0, bytes_accessed=bytes_accessed),
    )(x_nhwc, dw_w, pw_w)


def depthwise_separable_conv2d(x_nchw, depthwise_weight, pointwise_weight,
                               *, kernel_size=3, padding=None):
    """PyTorch-equivalent forward.

    x_nchw: (N, Cin, H, W); depthwise_weight: (Cin, 1, K, K) (torch layout);
    pointwise_weight: (Cout, Cin, 1, 1) (torch layout).  Returns (N, Cout, H, W).
    """
    K = kernel_size
    if padding is None:
        padding = K // 2
    assert padding == K // 2, "only stride-1 'same' padding implemented"
    # TODO(synk): stride/dilation and non-'same' padding kwargs of nn.Conv2d are
    # not implemented; this covers the stride=1, padding=K//2 forward.
    N, Cin, H, W = x_nchw.shape
    Cout = pointwise_weight.shape[0]

    dw_w = jnp.transpose(depthwise_weight.reshape(Cin, K * K), (1, 0))  # (K*K, Cin)
    pw_w = jnp.transpose(pointwise_weight.reshape(Cout, Cin), (1, 0))   # (Cin, Cout)

    x_nhwc = jnp.transpose(x_nchw, (0, 2, 3, 1))
    y_nhwc = dwsep_conv2d_nhwc(x_nhwc, dw_w, pw_w, kernel_size=K)
    return jnp.transpose(y_nhwc, (0, 3, 1, 2))


# ------------------------- pure-JAX reference (sanity check) -------------------------
def _ref_depthwise_separable_conv2d(x_nchw, depthwise_weight, pointwise_weight,
                                    *, kernel_size=3):
    K = kernel_size
    N, Cin, H, W = x_nchw.shape
    Cout = pointwise_weight.shape[0]
    x = jnp.transpose(x_nchw, (0, 2, 3, 1))                             # NHWC
    dw = jnp.transpose(depthwise_weight, (2, 3, 1, 0))                  # (K,K,1,Cin) HWIO
    y = lax.conv_general_dilated(
        x, dw, window_strides=(1, 1),
        padding=((K // 2, K // 2), (K // 2, K // 2)),
        dimension_numbers=("NHWC", "HWIO", "NHWC"),
        feature_group_count=Cin,
        preferred_element_type=jnp.float32)
    pw = jnp.transpose(pointwise_weight.reshape(Cout, Cin), (1, 0))     # (Cin, Cout)
    z = jnp.einsum("nhwc,cd->nhwd", y, pw, preferred_element_type=jnp.float32)
    return jnp.transpose(z, (0, 3, 1, 2))


if __name__ == "__main__":
    key = jax.random.PRNGKey(0)
    N, Cin, Cout, H, W, K = 2, 128, 256, 16, 16, 3

    kx, kd, kp = jax.random.split(key, 3)
    x_nchw = jax.random.normal(kx, (N, Cin, H, W), jnp.float32)
    # torch-layout weights: depthwise (Cin,1,K,K), pointwise (Cout,Cin,1,1)
    depthwise_w = jax.random.normal(kd, (Cin, 1, K, K), jnp.float32) * (1.0 / 3.0)
    pointwise_w = (jax.random.normal(kp, (Cout, Cin, 1, 1), jnp.float32)
                   / jnp.sqrt(jnp.float32(Cin)))

    out = depthwise_separable_conv2d(x_nchw, depthwise_w, pointwise_w, kernel_size=K)
    out = jax.block_until_ready(out)
    assert out.shape == (N, Cout, H, W)

    ref = _ref_depthwise_separable_conv2d(x_nchw, depthwise_w, pointwise_w,
                                          kernel_size=K)
    max_err = float(jnp.max(jnp.abs(out - ref)))
    ref_scale = float(jnp.max(jnp.abs(ref)))
    # bf16 MXU inputs with f32 accumulation => small bounded deviation vs f32 ref.
    assert max_err <= 2e-2 * max(1.0, ref_scale), (
        f"mismatch vs reference: max abs err {max_err} (ref scale {ref_scale})")

    print("KERNEL_OK")
</pallas_src>

<mosaic_0001>
module attributes {stable_mosaic.version = 11 : i64} {
  func.func @_dwsep_kernel(%arg0: i32, %arg1: memref<1x16x16x128xf32, #tpu.memory_space<vmem>>, %arg2: memref<9x128xf32, #tpu.memory_space<vmem>>, %arg3: memref<128x256xf32, #tpu.memory_space<vmem>>, %arg4: memref<1x16x16x256xf32, #tpu.memory_space<vmem>>) attributes {dimension_semantics = [#tpu.dimension_semantics<parallel>], iteration_bounds = array<i64: 2>, scalar_prefetch = 0 : i64, scratch_operands = 0 : i64, tpu.core_type = #tpu.core_type<tc>, window_params = [{transform_indices = @transform_0, window_bounds = array<i64: 1, 16, 16, 128>}, {pipeline_mode = #tpu.pipeline_mode<synchronous>, transform_indices = @transform_1, window_bounds = array<i64: 9, 128>}, {pipeline_mode = #tpu.pipeline_mode<synchronous>, transform_indices = @transform_2, window_bounds = array<i64: 128, 256>}, {transform_indices = @transform_3, window_bounds = array<i64: 1, 16, 16, 256>}]} {
    %c0 = arith.constant 0 : index
    %c0_0 = arith.constant 0 : index
    %c0_1 = arith.constant 0 : index
    %c0_2 = arith.constant 0 : index
    %0 = vector.load %arg1[%c0, %c0_0, %c0_1, %c0_2] : memref<1x16x16x128xf32, #tpu.memory_space<vmem>>, vector<1x16x16x128xf32>
    %1 = vector.shape_cast %0 : vector<1x16x16x128xf32> to vector<16x16x128xf32>
    %c0_3 = arith.constant 0 : index
    %c0_4 = arith.constant 0 : index
    %2 = vector.load %arg2[%c0_3, %c0_4] : memref<9x128xf32, #tpu.memory_space<vmem>>, vector<9x128xf32>
    %cst = arith.constant 0.000000e+00 : f32
    %3 = vector.broadcast %cst : f32 to vector<1x16x128xf32>
    %4 = tpu.concatenate %3, %1, %3 in 0 : vector<1x16x128xf32>, vector<16x16x128xf32>, vector<1x16x128xf32> -> vector<18x16x128xf32>
    %5 = tpu.iota {dimensions = array<i32: 1>} : vector<16x16x128xi32>
    %c-1_i32 = arith.constant -1 : i32
    %6 = vector.broadcast %c-1_i32 : i32 to vector<16x16x128xi32>
    %7 = arith.addi %5, %6 : vector<16x16x128xi32>
    %c0_i32 = arith.constant 0 : i32
    %8 = vector.broadcast %c0_i32 : i32 to vector<16x16x128xi32>
    %9 = arith.cmpi sge, %7, %8 : vector<16x16x128xi32>
    %c-1_i32_5 = arith.constant -1 : i32
    %10 = vector.broadcast %c-1_i32_5 : i32 to vector<16x16x128xi32>
    %11 = arith.addi %5, %10 : vector<16x16x128xi32>
    %c16_i32 = arith.constant 16 : i32
    %12 = vector.broadcast %c16_i32 : i32 to vector<16x16x128xi32>
    %13 = arith.cmpi slt, %11, %12 : vector<16x16x128xi32>
    %14 = arith.andi %9, %13 : vector<16x16x128xi1>
    %c1_i32 = arith.constant 1 : i32
    %15 = vector.broadcast %c1_i32 : i32 to vector<16x16x128xi32>
    %16 = arith.addi %5, %15 : vector<16x16x128xi32>
    %c0_i32_6 = arith.constant 0 : i32
    %17 = vector.broadcast %c0_i32_6 : i32 to vector<16x16x128xi32>
    %18 = arith.cmpi sge, %16, %17 : vector<16x16x128xi32>
    %c1_i32_7 = arith.constant 1 : i32
    %19 = vector.broadcast %c1_i32_7 : i32 to vector<16x16x128xi32>
    %20 = arith.addi %5, %19 : vector<16x16x128xi32>
    %c16_i32_8 = arith.constant 16 : i32
    %21 = vector.broadcast %c16_i32_8 : i32 to vector<16x16x128xi32>
    %22 = arith.cmpi slt, %20, %21 : vector<16x16x128xi32>
    %23 = arith.andi %18, %22 : vector<16x16x128xi1>
    %24 = vector.extract_strided_slice %4 {offsets = [0, 0, 0], sizes = [16, 16, 128], strides = [1, 1, 1]} : vector<18x16x128xf32> to vector<16x16x128xf32>
    %c1_i32_9 = arith.constant 1 : i32
    %25 = tpu.dynamic_rotate %24 by %c1_i32_9 dim 1 : vector<16x16x128xf32>, i32 -> vector<16x16x128xf32>
    %cst_10 = arith.constant 0.000000e+00 : f32
    %26 = vector.broadcast %cst_10 : f32 to vector<16x16x128xf32>
    %27 = arith.select %14, %25, %26 : vector<16x16x128xi1>, vector<16x16x128xf32>
    %28 = vector.extract_strided_slice %2 {offsets = [0, 0], sizes = [1, 128], strides = [1, 1]} : vector<9x128xf32> to vector<1x128xf32>
    %29 = vector.shape_cast %28 : vector<1x128xf32> to vector<1x1x128xf32>
    %30 = vector.broadcast %29 : vector<1x1x128xf32> to vector<16x16x128xf32>
    %31 = arith.mulf %27, %30 : vector<16x16x128xf32>
    %32 = vector.extract_strided_slice %2 {offsets = [1, 0], sizes = [1, 128], strides = [1, 1]} : vector<9x128xf32> to vector<1x128xf32>
    %33 = vector.shape_cast %32 : vector<1x128xf32> to vector<1x1x128xf32>
    %34 = vector.broadcast %33 : vector<1x1x128xf32> to vector<16x16x128xf32>
    %35 = arith.mulf %24, %34 : vector<16x16x128xf32>
    %36 = arith.addf %31, %35 : vector<16x16x128xf32>
    %c15_i32 = arith.constant 15 : i32
    %37 = tpu.dynamic_rotate %24 by %c15_i32 dim 1 : vector<16x16x128xf32>, i32 -> vector<16x16x128xf32>
    %cst_11 = arith.constant 0.000000e+00 : f32
    %38 = vector.broadcast %cst_11 : f32 to vector<16x16x128xf32>
    %39 = arith.select %23, %37, %38 : vector<16x16x128xi1>, vector<16x16x128xf32>
    %40 = vector.extract_strided_slice %2 {offsets = [2, 0], sizes = [1, 128], strides = [1, 1]} : vector<9x128xf32> to vector<1x128xf32>
    %41 = vector.shape_cast %40 : vector<1x128xf32> to vector<1x1x128xf32>
    %42 = vector.broadcast %41 : vector<1x1x128xf32> to vector<16x16x128xf32>
    %43 = arith.mulf %39, %42 : vector<16x16x128xf32>
    %44 = arith.addf %36, %43 : vector<16x16x128xf32>
    %45 = vector.extract_strided_slice %4 {offsets = [1, 0, 0], sizes = [16, 16, 128], strides = [1, 1, 1]} : vector<18x16x128xf32> to vector<16x16x128xf32>
    %c1_i32_12 = arith.constant 1 : i32
    %46 = tpu.dynamic_rotate %45 by %c1_i32_12 dim 1 : vector<16x16x128xf32>, i32 -> vector<16x16x128xf32>
    %cst_13 = arith.constant 0.000000e+00 : f32
    %47 = vector.broadcast %cst_13 : f32 to vector<16x16x128xf32>
    %48 = arith.select %14, %46, %47 : vector<16x16x128xi1>, vector<16x16x128xf32>
    %49 = vector.extract_strided_slice %2 {offsets = [3, 0], sizes = [1, 128], strides = [1, 1]} : vector<9x128xf32> to vector<1x128xf32>
    %50 = vector.shape_cast %49 : vector<1x128xf32> to vector<1x1x128xf32>
    %51 = vector.broadcast %50 : vector<1x1x128xf32> to vector<16x16x128xf32>
    %52 = arith.mulf %48, %51 : vector<16x16x128xf32>
    %53 = arith.addf %44, %52 : vector<16x16x128xf32>
    %54 = vector.extract_strided_slice %2 {offsets = [4, 0], sizes = [1, 128], strides = [1, 1]} : vector<9x128xf32> to vector<1x128xf32>
    %55 = vector.shape_cast %54 : vector<1x128xf32> to vector<1x1x128xf32>
    %56 = vector.broadcast %55 : vector<1x1x128xf32> to vector<16x16x128xf32>
    %57 = arith.mulf %45, %56 : vector<16x16x128xf32>
    %58 = arith.addf %53, %57 : vector<16x16x128xf32>
    %c15_i32_14 = arith.constant 15 : i32
    %59 = tpu.dynamic_rotate %45 by %c15_i32_14 dim 1 : vector<16x16x128xf32>, i32 -> vector<16x16x128xf32>
    %cst_15 = arith.constant 0.000000e+00 : f32
    %60 = vector.broadcast %cst_15 : f32 to vector<16x16x128xf32>
    %61 = arith.select %23, %59, %60 : vector<16x16x128xi1>, vector<16x16x128xf32>
    %62 = vector.extract_strided_slice %2 {offsets = [5, 0], sizes = [1, 128], strides = [1, 1]} : vector<9x128xf32> to vector<1x128xf32>
    %63 = vector.shape_cast %62 : vector<1x128xf32> to vector<1x1x128xf32>
    %64 = vector.broadcast %63 : vector<1x1x128xf32> to vector<16x16x128xf32>
    %65 = arith.mulf %61, %64 : vector<16x16x128xf32>
    %66 = arith.addf %58, %65 : vector<16x16x128xf32>
    %67 = vector.extract_strided_slice %4 {offsets = [2, 0, 0], sizes = [16, 16, 128], strides = [1, 1, 1]} : vector<18x16x128xf32> to vector<16x16x128xf32>
    %c1_i32_16 = arith.constant 1 : i32
    %68 = tpu.dynamic_rotate %67 by %c1_i32_16 dim 1 : vector<16x16x128xf32>, i32 -> vector<16x16x128xf32>
    %cst_17 = arith.constant 0.000000e+00 : f32
    %69 = vector.broadcast %cst_17 : f32 to vector<16x16x128xf32>
    %70 = arith.select %14, %68, %69 : vector<16x16x128xi1>, vector<16x16x128xf32>
    %71 = vector.extract_strided_slice %2 {offsets = [6, 0], sizes = [1, 128], strides = [1, 1]} : vector<9x128xf32> to vector<1x128xf32>
    %72 = vector.shape_cast %71 : vector<1x128xf32> to vector<1x1x128xf32>
    %73 = vector.broadcast %72 : vector<1x1x128xf32> to vector<16x16x128xf32>
    %74 = arith.mulf %70, %73 : vector<16x16x128xf32>
    %75 = arith.addf %66, %74 : vector<16x16x128xf32>
    %76 = vector.extract_strided_slice %2 {offsets = [7, 0], sizes = [1, 128], strides = [1, 1]} : vector<9x128xf32> to vector<1x128xf32>
    %77 = vector.shape_cast %76 : vector<1x128xf32> to vector<1x1x128xf32>
    %78 = vector.broadcast %77 : vector<1x1x128xf32> to vector<16x16x128xf32>
    %79 = arith.mulf %67, %78 : vector<16x16x128xf32>
    %80 = arith.addf %75, %79 : vector<16x16x128xf32>
    %c15_i32_18 = arith.constant 15 : i32
    %81 = tpu.dynamic_rotate %67 by %c15_i32_18 dim 1 : vector<16x16x128xf32>, i32 -> vector<16x16x128xf32>
    %cst_19 = arith.constant 0.000000e+00 : f32
    %82 = vector.broadcast %cst_19 : f32 to vector<16x16x128xf32>
    %83 = arith.select %23, %81, %82 : vector<16x16x128xi1>, vector<16x16x128xf32>
    %84 = vector.extract_strided_slice %2 {offsets = [8, 0], sizes = [1, 128], strides = [1, 1]} : vector<9x128xf32> to vector<1x128xf32>
    %85 = vector.shape_cast %84 : vector<1x128xf32> to vector<1x1x128xf32>
    %86 = vector.broadcast %85 : vector<1x1x128xf32> to vector<16x16x128xf32>
    %87 = arith.mulf %83, %86 : vector<16x16x128xf32>
    %88 = arith.addf %80, %87 : vector<16x16x128xf32>
    %89 = vector.shape_cast %88 : vector<16x16x128xf32> to vector<256x128xf32>
    %90 = arith.truncf %89 : vector<256x128xf32> to vector<256x128xbf16>
    %c0_20 = arith.constant 0 : index
    %c0_21 = arith.constant 0 : index
    %91 = vector.load %arg3[%c0_20, %c0_21] : memref<128x256xf32, #tpu.memory_space<vmem>>, vector<128x256xf32>
    %92 = arith.truncf %91 : vector<128x256xf32> to vector<128x256xbf16>
    %cst_22 = arith.constant dense<0.000000e+00> : vector<256x256xf32>
    %93 = tpu.matmul %90, %92, %cst_22 {dimension_numbers = #tpu.dot_dimension_numbers<[1], [0], [0], [1], [0, 0, 1, 1], [], []>} : vector<256x128xbf16>, vector<128x256xbf16>, vector<256x256xf32> -> vector<256x256xf32>
    %94 = vector.shape_cast %93 : vector<256x256xf32> to vector<1x16x16x256xf32>
    %c0_23 = arith.constant 0 : index
    %c0_24 = arith.constant 0 : index
    %c0_25 = arith.constant 0 : index
    %c0_26 = arith.constant 0 : index
    %95 = vector.load %arg4[%c0_23, %c0_24, %c0_25, %c0_26] : memref<1x16x16x256xf32, #tpu.memory_space<vmem>>, vector<1x16x16x256xf32>
    tpu.vector_store %arg4[%c0_23, %c0_24, %c0_25, %c0_26], %94 {strides = array<i32>} : memref<1x16x16x256xf32, #tpu.memory_space<vmem>>, vector<1x16x16x256xf32>,
    return
  }
  func.func @transform_0(%arg0: i32) -> (i32, i32, i32, i32) {
    %c0_i32 = arith.constant 0 : i32
    %c0_i32_0 = arith.constant 0 : i32
    %c0_i32_1 = arith.constant 0 : i32
    %c0_i32_2 = arith.constant 0 : i32
    return %arg0, %c0_i32, %c0_i32_0, %c0_i32_1 : i32, i32, i32, i32
  }
  func.func @transform_1(%arg0: i32) -> (i32, i32) {
    %c0_i32 = arith.constant 0 : i32
    %c0_i32_0 = arith.constant 0 : i32
    %c0_i32_1 = arith.constant 0 : i32
    return %c0_i32, %c0_i32_0 : i32, i32
  }
  func.func @transform_2(%arg0: i32) -> (i32, i32) {
    %c0_i32 = arith.constant 0 : i32
    %c0_i32_0 = arith.constant 0 : i32
    %c0_i32_1 = arith.constant 0 : i32
    return %c0_i32, %c0_i32_0 : i32, i32
  }
  func.func @transform_3(%arg0: i32) -> (i32, i32, i32, i32) {
    %c0_i32 = arith.constant 0 : i32
    %c0_i32_0 = arith.constant 0 : i32
    %c0_i32_1 = arith.constant 0 : i32
    %c0_i32_2 = arith.constant 0 : i32
    return %arg0, %c0_i32, %c0_i32_0, %c0_i32_1 : i32, i32, i32, i32
  }
}

</mosaic_0001>

<llo_original>
// kernel: tpu_custom_call.1
$region0: #{tpu_custom_call.1}
  #allocation0 [shape = 'u32[]', space=smem, size = 0x4, offset = 0x4, fixed_abs, tag = 'smem constant byte address 0x4 - core index']
  #allocation1 [shape = 'u32[144,128]{1,0:T(1,128)}', space=vmem, size = 0x12000, scoped, tag = 'internal scratch']
  %s0 = inlined_call_operand.hbm [shape: f32[2,16,16,128], index: 0, kind: input, shape index: {}]
  %s1 = inlined_call_operand.hbm [shape: f32[9,128], index: 1, kind: input, shape index: {}]
  %s2 = inlined_call_operand.hbm [shape: f32[128,256], index: 2, kind: input, shape index: {}]
  %s3 = inlined_call_operand.hbm [shape: f32[2,16,16,256], index: 3, kind: output, shape index: {}]
  %s4 = sld [smem:[#allocation0]]
  $region57: #{tpu_custom_call.1} parent=0
    _
  %s6 = ssub.s32 1, %s4
  %s7 = scalar_select 0, %s6, %s4
  $region1: #{tpu_custom_call.1} parent=0
    #allocation2 [shape = 'u8[262144]{0}', space=vmem, size = 0x40000, scoped, tag = 'input window, operand 0']
    #allocation3 [shape = 's32[2]{0}', space=sflag, size = 0x8, scoped, tag = 'scoped memory for tpu_custom_call.1']
    #allocation4 [shape = 's32[2]{0}', space=sflag, size = 0x8, scoped, tag = 'scoped memory for tpu_custom_call.1']
    #allocation5 [shape = 'u8[8192]{0}', space=vmem, size = 0x2000, scoped, tag = 'input window, operand 1, single buffered']
    #allocation6 [shape = 's32[1]{0}', space=sflag, size = 0x4, scoped, tag = 'scoped memory for tpu_custom_call.1']
    #allocation7 [shape = 'u8[131072]{0}', space=vmem, size = 0x20000, scoped, tag = 'input window, operand 2, single buffered']
    #allocation8 [shape = 'u8[524288]{0}', space=vmem, size = 0x80000, scoped, tag = 'output window, operand 0']
    %8 = vsyncpa [#allocation3], 0
    %s9 = scalar_lea.sflag [#allocation3], 1
    %10 = vsyncpa %s9, 0
    %11 = vsyncpa [#allocation6], 0
    %12 = vsyncpa [#allocation4], 0
    %s13 = scalar_lea.sflag [#allocation4], 1
    %14 = vsyncpa %s13, 0
    loop: start=0, step=1, limit=4
    $region2: #{tpu_custom_call.1} parent=1 // loop_pre_header
      _
    $region3: #{tpu_custom_call.1} parent=1 // loop_header
      %s16 = sphi 0, %s20
      %p17 = scmp.ge.s32.totalorder %s16, 4
      %s26 = sphi 0, %s28
      %s29 = sphi 0, %s26
      %s30 = sphi 0, %s29
      %s46 = sphi 0, %s30
      %s50 = sphi 0, %s50
      %s52 = sphi 0, %s50
      %s53 = sphi 0, %s52
      %s67 = sphi 0, %s53
      %s71 = sphi 0, %s71
      %s73 = sphi 0, %s71
      %s74 = sphi 0, %s73
      %s88 = sphi 0, %s74
      %s94 = sphi 0, %s96
      %s97 = sphi 0, %s94
      %s98 = sphi 0, %s97
      %s114 = sphi 0, %s98
    $region4: #{tpu_custom_call.1} parent=1 // loop_header_branch
      %19 = sbr.rel (%p17) target = $region8
    $region5: #{tpu_custom_call.1} parent=1 // loop_body
      %s21 = ssub.s32 %s16, 1
      %s22 = ssub.s32 %s16, 2
      %s23 = sadd.s32 %s16, 1
      %s24 = ssub.s32 %s16, %s23
      %p25 = scmp.eq.s32.totalorder %s24, 0
      %s27 = sadd.s32 %s26, 1
      %s28 = scalar_select %p25, %s26, %s27
      %p31 = pneg %p25
      %p32 = scmp.eq.s32.totalorder %s16, 1
      %p33 = por %p31, %p32
      %p34 = scmp.ne.s32.totalorder %s26, %s29
      %p35 = scmp.eq.s32.totalorder %s16, 0
      %p36 = por %p34, %p35
      %p37 = scmp.ne.s32.totalorder %s26, %s29
      %p38 = scmp.eq.s32.totalorder %s21, 1
      %p39 = por %p37, %p38
      %p40 = scmp.ne.s32.totalorder %s29, %s30
      %p41 = scmp.eq.s32.totalorder %s21, 0
      %p42 = por %p40, %p41
      %p43 = scmp.ne.s32.totalorder %s29, %s30
      %p44 = scmp.eq.s32.totalorder %s22, 1
      %p45 = por %p43, %p44
      %p47 = scmp.ne.s32.totalorder %s30, %s46
      %p48 = scmp.eq.s32.totalorder %s22, 0
      %p49 = por %p47, %p48
      %s51 = sadd.s32 %s50, 1
      %p54 = scmp.eq.s32.totalorder %s16, 1
      %p55 = scmp.ne.s32.totalorder %s50, %s52
      %p56 = scmp.eq.s32.totalorder %s16, 0
      %p57 = por %p55, %p56
      %p58 = scmp.ne.s32.totalorder %s50, %s52
      %p59 = scmp.eq.s32.totalorder %s21, 1
      %p60 = por %p58, %p59
      %p61 = scmp.ne.s32.totalorder %s52, %s53
      %p62 = scmp.eq.s32.totalorder %s21, 0
      %p63 = por %p61, %p62
      %p64 = scmp.ne.s32.totalorder %s52, %s53
      %p65 = scmp.eq.s32.totalorder %s22, 1
      %p66 = por %p64, %p65
      %p68 = scmp.ne.s32.totalorder %s53, %s67
      %p69 = scmp.eq.s32.totalorder %s22, 0
      %p70 = por %p68, %p69
      %s72 = sadd.s32 %s71, 1
      %p75 = scmp.eq.s32.totalorder %s16, 1
      %p76 = scmp.ne.s32.totalorder %s71, %s73
      %p77 = scmp.eq.s32.totalorder %s16, 0
      %p78 = por %p76, %p77
      %p79 = scmp.ne.s32.totalorder %s71, %s73
      %p80 = scmp.eq.s32.totalorder %s21, 1
      %p81 = por %p79, %p80
      %p82 = scmp.ne.s32.totalorder %s73, %s74
      %p83 = scmp.eq.s32.totalorder %s21, 0
      %p84 = por %p82, %p83
      %p85 = scmp.ne.s32.totalorder %s73, %s74
      %p86 = scmp.eq.s32.totalorder %s22, 1
      %p87 = por %p85, %p86
      %p89 = scmp.ne.s32.totalorder %s74, %s88
      %p90 = scmp.eq.s32.totalorder %s22, 0
      %p91 = por %p89, %p90
      %s92 = ssub.s32 %s16, %s23
      %p93 = scmp.eq.s32.totalorder %s92, 0
      %s95 = sadd.s32 %s94, 1
      %s96 = scalar_select %p93, %s94, %s95
      %p99 = pneg %p93
      %p100 = scmp.eq.s32.totalorder %s16, 1
      %p101 = por %p99, %p100
      %p102 = scmp.ne.s32.totalorder %s94, %s97
      %p103 = scmp.eq.s32.totalorder %s16, 0
      %p104 = por %p102, %p103
      %p105 = scmp.ne.s32.totalorder %s94, %s97
      %p106 = scmp.eq.s32.totalorder %s21, 1
      %p107 = por %p105, %p106
      %p108 = scmp.ne.s32.totalorder %s97, %s98
      %p109 = scmp.eq.s32.totalorder %s21, 0
      %p110 = por %p108, %p109
      %p111 = scmp.ne.s32.totalorder %s97, %s98
      %p112 = scmp.eq.s32.totalorder %s22, 1
      %p113 = por %p111, %p112
      %p115 = scmp.ne.s32.totalorder %s98, %s114
      %p116 = scmp.eq.s32.totalorder %s22, 0
      %p117 = por %p115, %p116
      %p118 = scmp.le.s32.totalorder 1, %s16
      %p119 = scmp.lt.s32.totalorder %s16, 3
      %p120 = pnand %p118, %p119
      %p121 = pneg %p120
      // Predicated region
      $region9: #{tpu_custom_call.1} parent=5 // pred_check
        _
      $region10: #{tpu_custom_call.1} parent=5 // pred_check_branch
        %123 = sbr.rel (%p120) target = $region12
      $region11: #{tpu_custom_call.1} parent=5 // pred_region
        %s124 = ssub.s32 %s16, 1
        // Predicated region
        $region13: #{tpu_custom_call.1} parent=11 // pred_check
          %p125 = pneg %p63
        $region14: #{tpu_custom_call.1} parent=11 // pred_check_branch
          %127 = sbr.rel (%p125) target = $region16
        $region15: #{tpu_custom_call.1} parent=11 // pred_region
          %s129 = ssub.s32 256, 256
          %130 = vsyncadd [#allocation6], %s129
          %s131 = sshll.u32 [#allocation5], 4
          %s132 = int_to_ptr.vmem [resolvable:$true] %s131
          %137 = dma.hbm_to_vmem [thread:$0]  %s1, 256, %s132, [#allocation6], 128, 128, 8
        $region16: #{tpu_custom_call.1} parent=11 // pred_fallthru
          _
        // Predicated region
        $region17: #{tpu_custom_call.1} parent=11 // pred_check
          %p138 = pneg %p84
        $region18: #{tpu_custom_call.1} parent=11 // pred_check_branch
          %140 = sbr.rel (%p138) target = $region20
        $region19: #{tpu_custom_call.1} parent=11 // pred_region
          %s142 = ssub.s32 4096, 4096
          %143 = vsyncadd [#allocation6], %s142
          %s144 = sshll.u32 [#allocation7], 4
          %s145 = int_to_ptr.vmem [resolvable:$true] %s144
          %150 = dma.hbm_to_vmem [thread:$0]  %s2, 4096, %s145, [#allocation6], 256, 256, 16
        $region20: #{tpu_custom_call.1} parent=11 // pred_fallthru
          _
      $region12: #{tpu_custom_call.1} parent=5 // pred_fallthru
        _
      %p151 = scmp.lt.s32.totalorder %s16, 2
      // Predicated region
      $region21: #{tpu_custom_call.1} parent=5 // pred_check
        %p152 = pneg %p151
      $region22: #{tpu_custom_call.1} parent=5 // pred_check_branch
        %154 = sbr.rel (%p152) target = $region24
      $region23: #{tpu_custom_call.1} parent=5 // pred_region
        // Predicated region
        $region25: #{tpu_custom_call.1} parent=23 // pred_check
          %p155 = pneg %p36
        $region26: #{tpu_custom_call.1} parent=23 // pred_check_branch
          %157 = sbr.rel (%p155) target = $region28
        $region27: #{tpu_custom_call.1} parent=23 // pred_region
          %s158 = sand.u32 %s26, 1
          %s159 = scalar_lea.sflag [#allocation3], %s158
          %s160 = sand.u32 %s26, 1
          %s161 = smul.addr %s160, 256
          %s162 = scalar_lea.vmem [#allocation2], %s161
          %s164 = ssub.s32 4096, 4096
          %165 = vsyncadd %s159, %s164
          %s166 = smul.addr %s16, 32
          %s167 = smul.addr %s166, 128
          %s168 = scalar_lea.hbm %s0, %s167
          %s169 = sshll.u32 %s162, 4
          %s170 = int_to_ptr.vmem [resolvable:$true] %s169
          %175 = dma.hbm_to_vmem [thread:$0]  %s168, 4096, %s170, %s159, 128, 128, 8
        $region28: #{tpu_custom_call.1} parent=23 // pred_fallthru
          _
      $region24: #{tpu_custom_call.1} parent=5 // pred_fallthru
        _
      %p176 = scmp.le.s32.totalorder 1, %s16
      %p177 = scmp.lt.s32.totalorder %s16, 3
      %p178 = pnand %p176, %p177
      %p179 = pneg %p178
      // Predicated region
      $region29: #{tpu_custom_call.1} parent=5 // pred_check
        _
      $region30: #{tpu_custom_call.1} parent=5 // pred_check_branch
        %181 = sbr.rel (%p178) target = $region32
      $region31: #{tpu_custom_call.1} parent=5 // pred_region
        %s182 = ssub.s32 %s16, 1
        %s183 = sand.u32 %s29, 1
        %s184 = scalar_lea.sflag [#allocation3], %s183
        %s185 = sand.u32 %s29, 1
        %s186 = smul.addr %s185, 256
        %s187 = scalar_lea.vmem [#allocation2], %s186
        // Predicated region
        $region33: #{tpu_custom_call.1} parent=31 // pred_check
          %p188 = pneg %p42
        $region34: #{tpu_custom_call.1} parent=31 // pred_check_branch
          %190 = sbr.rel (%p188) target = $region36
        $region35: #{tpu_custom_call.1} parent=31 // pred_region
          %191 = dma.done %s184, 4096
        $region36: #{tpu_custom_call.1} parent=31 // pred_fallthru
          _
        // Predicated region
        $region37: #{tpu_custom_call.1} parent=31 // pred_check
          %p192 = pneg %p63
        $region38: #{tpu_custom_call.1} parent=31 // pred_check_branch
          %194 = sbr.rel (%p192) target = $region40
        $region39: #{tpu_custom_call.1} parent=31 // pred_region
          %195 = dma.done [#allocation6], 256
        $region40: #{tpu_custom_call.1} parent=31 // pred_fallthru
          _
        // Predicated region
        $region41: #{tpu_custom_call.1} parent=31 // pred_check
          %p196 = pneg %p84
        $region42: #{tpu_custom_call.1} parent=31 // pred_check_branch
          %198 = sbr.rel (%p196) target = $region44
        $region43: #{tpu_custom_call.1} parent=31 // pred_region
          %199 = dma.done [#allocation6], 4096
        $region44: #{tpu_custom_call.1} parent=31 // pred_fallthru
          _
        %s200 = sand.u32 %s29, 1
        %s201 = scalar_lea.sflag [#allocation3], %s200
        %s202 = sand.u32 %s29, 1
        %s203 = smul.addr %s202, 256
        %s204 = scalar_lea.vmem [#allocation2], %s203
        %p205 = pneg %p42
        %p206 = pneg %p39
        %p207 = pneg %p63
        %p208 = pneg %p60
        %p209 = pneg %p84
        %p210 = pneg %p81
        %p211 = pneg %p110
        %p212 = pneg %p107
        %s213 = sand.u32 %s97, 1
        %s214 = scalar_lea.sflag [#allocation4], %s213
        %s215 = sand.u32 %s97, 1
        %s216 = smul.addr %s215, 512
        %s217 = scalar_lea.vmem [#allocation8], %s216
        %v219 = vld [vmem:[%s187] sm:$0xff]
        %v220 = vld [vmem:[%s187 + $0x8] sm:$0xff]
        %v221 = vld [vmem:[%s187 + $0x10] sm:$0xff]
        %v222 = vld [vmem:[%s187 + $0x18] sm:$0xff]
        %v223 = vld [vmem:[%s187 + $0x20] sm:$0xff]
        %v224 = vld [vmem:[%s187 + $0x28] sm:$0xff]
        %v225 = vld [vmem:[%s187 + $0x30] sm:$0xff]
        %v226 = vld [vmem:[%s187 + $0x38] sm:$0xff]
        %v227 = vld [vmem:[%s187 + $0x40] sm:$0xff]
        %v228 = vld [vmem:[%s187 + $0x48] sm:$0xff]
        %v229 = vld [vmem:[%s187 + $0x50] sm:$0xff]
        %v230 = vld [vmem:[%s187 + $0x58] sm:$0xff]
        %v231 = vld [vmem:[%s187 + $0x60] sm:$0xff]
        %v232 = vld [vmem:[%s187 + $0x68] sm:$0xff]
        %v233 = vld [vmem:[%s187 + $0x70] sm:$0xff]
        %v234 = vld [vmem:[%s187 + $0x78] sm:$0xff]
        %v235 = vld [vmem:[%s187 + $0x80] sm:$0xff]
        %v236 = vld [vmem:[%s187 + $0x88] sm:$0xff]
        %v237 = vld [vmem:[%s187 + $0x90] sm:$0xff]
        %v238 = vld [vmem:[%s187 + $0x98] sm:$0xff]
        %v239 = vld [vmem:[%s187 + $0xa0] sm:$0xff]
        %v240 = vld [vmem:[%s187 + $0xa8] sm:$0xff]
        %v241 = vld [vmem:[%s187 + $0xb0] sm:$0xff]
        %v242 = vld [vmem:[%s187 + $0xb8] sm:$0xff]
        %v243 = vld [vmem:[%s187 + $0xc0] sm:$0xff]
        %v244 = vld [vmem:[%s187 + $0xc8] sm:$0xff]
        %v245 = vld [vmem:[%s187 + $0xd0] sm:$0xff]
        %v246 = vld [vmem:[%s187 + $0xd8] sm:$0xff]
        %v247 = vld [vmem:[%s187 + $0xe0] sm:$0xff]
        %v248 = vld [vmem:[%s187 + $0xe8] sm:$0xff]
        %v249 = vld [vmem:[%s187 + $0xf0] sm:$0xff]
        %v250 = vld [vmem:[%s187 + $0xf8] sm:$0xff]
        %v251 = vld [vmem:[#allocation5] sm:$0xff]
        %v252 = vld [vmem:[#allocation5 + $0x8] sm:$0x1]
        %v253 = vlaneseq
        %v254 = vshrl.u32 %v253, 7
        %v255 = vadd.s32 %v254, 8
        %v256 = vadd.s32 %v254, 4294967295
        %v257 = vadd.s32 %v255, 4294967295
        %vm258 = vcmp.ge.s32.totalorder %v256, 0
        %vm259 = vcmp.ge.s32.totalorder %v257, 0
        %vm260 = vcmp.lt.s32.totalorder %v256, 16
        %vm261 = vcmp.lt.s32.totalorder %v257, 16
        %vm262 = vmand %vm258, %vm260
        %vm263 = vmand %vm259, %vm261
        %v264 = vadd.s32 %v254, 1
        %v265 = vadd.s32 %v255, 1
        %vm266 = vcmp.ge.s32.totalorder %v264, 0
        %vm267 = vcmp.ge.s32.totalorder %v265, 0
        %vm268 = vcmp.lt.s32.totalorder %v264, 16
        %vm269 = vcmp.lt.s32.totalorder %v265, 16
        %vm270 = vmand %vm266, %vm268
        %vm271 = vmand %vm267, %vm269
        %v272 = vrot.slane %v219, 7
        %v273 = vrot.slane %v221, 7
        %v274 = vrot.slane %v223, 7
        %v275 = vrot.slane %v225, 7
        %v276 = vrot.slane %v227, 7
        %v277 = vrot.slane %v229, 7
        %v278 = vrot.slane %v231, 7
        %v279 = vrot.slane %v233, 7
        %v280 = vrot.slane %v235, 7
        %v281 = vrot.slane %v237, 7
        %v282 = vrot.slane %v239, 7
        %v283 = vrot.slane %v241, 7
        %v284 = vrot.slane %v243, 7
        %v285 = vrot.slane %v245, 7
        %v286 = vrot.slane %v247, 7
        %v287 = vrot.slane %v220, 7
        %v288 = vrot.slane %v222, 7
        %v289 = vrot.slane %v224, 7
        %v290 = vrot.slane %v226, 7
        %v291 = vrot.slane %v228, 7
        %v292 = vrot.slane %v230, 7
        %v293 = vrot.slane %v232, 7
        %v294 = vrot.slane %v234, 7
        %v295 = vrot.slane %v236, 7
        %v296 = vrot.slane %v238, 7
        %v297 = vrot.slane %v240, 7
        %v298 = vrot.slane %v242, 7
        %v299 = vrot.slane %v244, 7
        %v300 = vrot.slane %v246, 7
        %v301 = vrot.slane %v248, 7
        %vm302 = vcmp.lt.s32.totalorder %v254, 1
        %v303 = vsel %vm302, %v272, %v287
        %v304 = vsel %vm302, %v273, %v288
        %v305 = vsel %vm302, %v274, %v289
        %v306 = vsel %vm302, %v275, %v290
        %v307 = vsel %vm302, %v276, %v291
        %v308 = vsel %vm302, %v277, %v292
        %v309 = vsel %vm302, %v278, %v293
        %v310 = vsel %vm302, %v279, %v294
        %v311 = vsel %vm302, %v280, %v295
        %v312 = vsel %vm302, %v281, %v296
        %v313 = vsel %vm302, %v282, %v297
        %v314 = vsel %vm302, %v283, %v298
        %v315 = vsel %vm302, %v284, %v299
        %v316 = vsel %vm302, %v285, %v300
        %v317 = vsel %vm302, %v286, %v301
        %v318 = vsel %vm302, %v287, %v272
        %v319 = vsel %vm302, %v288, %v273
        %v320 = vsel %vm302, %v289, %v274
        %v321 = vsel %vm302, %v290, %v275
        %v322 = vsel %vm302, %v291, %v276
        %v323 = vsel %vm302, %v292, %v277
        %v324 = vsel %vm302, %v293, %v278
        %v325 = vsel %vm302, %v294, %v279
        %v326 = vsel %vm302, %v295, %v280
        %v327 = vsel %vm302, %v296, %v281
        %v328 = vsel %vm302, %v297, %v282
        %v329 = vsel %vm302, %v298, %v283
        %v330 = vsel %vm302, %v299, %v284
        %v331 = vsel %vm302, %v300, %v285
        %v332 = vsel %vm302, %v301, %v286
        %v333 = vsel %vm262, 0.0, 0.0
        %v334 = vsel %vm263, 0.0, 0.0
        %v335 = vsel %vm262, %v318, 0.0
        %v336 = vsel %vm263, %v303, 0.0
        %v337 = vsel %vm262, %v319, 0.0
        %v338 = vsel %vm263, %v304, 0.0
        %v339 = vsel %vm262, %v320, 0.0
        %v340 = vsel %vm263, %v305, 0.0
        %v341 = vsel %vm262, %v321, 0.0
        %v342 = vsel %vm263, %v306, 0.0
        %v343 = vsel %vm262, %v322, 0.0
        %v344 = vsel %vm263, %v307, 0.0
        %v345 = vsel %vm262, %v323, 0.0
        %v346 = vsel %vm263, %v308, 0.0
        %v347 = vsel %vm262, %v324, 0.0
        %v348 = vsel %vm263, %v309, 0.0
        %v349 = vsel %vm262, %v325, 0.0
        %v350 = vsel %vm263, %v310, 0.0
        %v351 = vsel %vm262, %v326, 0.0
        %v352 = vsel %vm263, %v311, 0.0
        %v353 = vsel %vm262, %v327, 0.0
        %v354 = vsel %vm263, %v312, 0.0
        %v355 = vsel %vm262, %v328, 0.0
        %v356 = vsel %vm263, %v313, 0.0
        %v357 = vsel %vm262, %v329, 0.0
        %v358 = vsel %vm263, %v314, 0.0
        %v359 = vsel %vm262, %v330, 0.0
        %v360 = vsel %vm263, %v315, 0.0
        %v361 = vsel %vm262, %v331, 0.0
        %v362 = vsel %vm263, %v316, 0.0
        %v363 = vsel %vm262, %v332, 0.0
        %v364 = vsel %vm263, %v317, 0.0
        %v365 = vlaneseq
        %v366 = vshrl.u32 %v365, 7
        %v367 = vsub.s32 0, %v366
        %v368 = vrot.slane %v251, %v367
        %v369 = vmul.f32 %v333, %v368
        %v370 = vmul.f32 %v334, %v368
        %v371 = vmul.f32 %v335, %v368
        %v372 = vmul.f32 %v336, %v368
        %v373 = vmul.f32 %v337, %v368
        %v374 = vmul.f32 %v338, %v368
        %v375 = vmul.f32 %v339, %v368
        %v376 = vmul.f32 %v340, %v368
        %v377 = vmul.f32 %v341, %v368
        %v378 = vmul.f32 %v342, %v368
        %v379 = vmul.f32 %v343, %v368
        %v380 = vmul.f32 %v344, %v368
        %v381 = vmul.f32 %v345, %v368
        %v382 = vmul.f32 %v346, %v368
        %v383 = vmul.f32 %v347, %v368
        %v384 = vmul.f32 %v348, %v368
        %v385 = vmul.f32 %v349, %v368
        %v386 = vmul.f32 %v350, %v368
        %v387 = vmul.f32 %v351, %v368
        %v388 = vmul.f32 %v352, %v368
        %v389 = vmul.f32 %v353, %v368
        %v390 = vmul.f32 %v354, %v368
        %v391 = vmul.f32 %v355, %v368
        %v392 = vmul.f32 %v356, %v368
        %v393 = vmul.f32 %v357, %v368
        %v394 = vmul.f32 %v358, %v368
        %v395 = vmul.f32 %v359, %v368
        %v396 = vmul.f32 %v360, %v368
        %v397 = vmul.f32 %v361, %v368
        %v398 = vmul.f32 %v362, %v368
        %v399 = vmul.f32 %v363, %v368
        %v400 = vmul.f32 %v364, %v368
        %v401 = vlaneseq
        %v402 = vshrl.u32 %v401, 7
        %v403 = vsub.s32 1, %v402
        %v404 = vrot.slane %v251, %v403
        %v405 = vmul.f32 %v404, 0.0
        %v406 = vmul.f32 %v219, %v404
        %v407 = vmul.f32 %v220, %v404
        %v408 = vmul.f32 %v221, %v404
        %v409 = vmul.f32 %v222, %v404
        %v410 = vmul.f32 %v223, %v404
        %v411 = vmul.f32 %v224, %v404
        %v412 = vmul.f32 %v225, %v404
        %v413 = vmul.f32 %v226, %v404
        %v414 = vmul.f32 %v227, %v404
        %v415 = vmul.f32 %v228, %v404
        %v416 = vmul.f32 %v229, %v404
        %v417 = vmul.f32 %v230, %v404
        %v418 = vmul.f32 %v231, %v404
        %v419 = vmul.f32 %v232, %v404
        %v420 = vmul.f32 %v233, %v404
        %v421 = vmul.f32 %v234, %v404
        %v422 = vmul.f32 %v235, %v404
        %v423 = vmul.f32 %v236, %v404
        %v424 = vmul.f32 %v237, %v404
        %v425 = vmul.f32 %v238, %v404
        %v426 = vmul.f32 %v239, %v404
        %v427 = vmul.f32 %v240, %v404
        %v428 = vmul.f32 %v241, %v404
        %v429 = vmul.f32 %v242, %v404
        %v430 = vmul.f32 %v243, %v404
        %v431 = vmul.f32 %v244, %v404
        %v432 = vmul.f32 %v245, %v404
        %v433 = vmul.f32 %v246, %v404
        %v434 = vmul.f32 %v247, %v404
        %v435 = vmul.f32 %v248, %v404
        %v436 = vadd.f32 %v369, %v405
        %v437 = vadd.f32 %v370, %v405
        %v438 = vadd.f32 %v371, %v406
        %v439 = vadd.f32 %v372, %v407
        %v440 = vadd.f32 %v373, %v408
        %v441 = vadd.f32 %v374, %v409
        %v442 = vadd.f32 %v375, %v410
        %v443 = vadd.f32 %v376, %v411
        %v444 = vadd.f32 %v377, %v412
        %v445 = vadd.f32 %v378, %v413
        %v446 = vadd.f32 %v379, %v414
        %v447 = vadd.f32 %v380, %v415
        %v448 = vadd.f32 %v381, %v416
        %v449 = vadd.f32 %v382, %v417
        %v450 = vadd.f32 %v383, %v418
        %v451 = vadd.f32 %v384, %v419
        %v452 = vadd.f32 %v385, %v420
        %v453 = vadd.f32 %v386, %v421
        %v454 = vadd.f32 %v387, %v422
        %v455 = vadd.f32 %v388, %v423
        %v456 = vadd.f32 %v389, %v424
        %v457 = vadd.f32 %v390, %v425
        %v458 = vadd.f32 %v391, %v426
        %v459 = vadd.f32 %v392, %v427
        %v460 = vadd.f32 %v393, %v428
        %v461 = vadd.f32 %v394, %v429
        %v462 = vadd.f32 %v395, %v430
        %v463 = vadd.f32 %v396, %v431
        %v464 = vadd.f32 %v397, %v432
        %v465 = vadd.f32 %v398, %v433
        %v466 = vadd.f32 %v399, %v434
        %v467 = vadd.f32 %v400, %v435
        %v468 = vrot.slane %v219, 1
        %v469 = vrot.slane %v221, 1
        %v470 = vrot.slane %v223, 1
        %v471 = vrot.slane %v225, 1
        %v472 = vrot.slane %v227, 1
        %v473 = vrot.slane %v229, 1
        %v474 = vrot.slane %v231, 1
        %v475 = vrot.slane %v233, 1
        %v476 = vrot.slane %v235, 1
        %v477 = vrot.slane %v237, 1
        %v478 = vrot.slane %v239, 1
        %v479 = vrot.slane %v241, 1
        %v480 = vrot.slane %v243, 1
        %v481 = vrot.slane %v245, 1
        %v482 = vrot.slane %v247, 1
        %v483 = vrot.slane %v220, 1
        %v484 = vrot.slane %v222, 1
        %v485 = vrot.slane %v224, 1
        %v486 = vrot.slane %v226, 1
        %v487 = vrot.slane %v228, 1
        %v488 = vrot.slane %v230, 1
        %v489 = vrot.slane %v232, 1
        %v490 = vrot.slane %v234, 1
        %v491 = vrot.slane %v236, 1
        %v492 = vrot.slane %v238, 1
        %v493 = vrot.slane %v240, 1
        %v494 = vrot.slane %v242, 1
        %v495 = vrot.slane %v244, 1
        %v496 = vrot.slane %v246, 1
        %v497 = vrot.slane %v248, 1
        %vm498 = vcmp.lt.s32.totalorder %v254, 7
        %v499 = vsel %vm498, %v468, %v483
        %v500 = vsel %vm498, %v469, %v484
        %v501 = vsel %vm498, %v470, %v485
        %v502 = vsel %vm498, %v471, %v486
        %v503 = vsel %vm498, %v472, %v487
        %v504 = vsel %vm498, %v473, %v488
        %v505 = vsel %vm498, %v474, %v489
        %v506 = vsel %vm498, %v475, %v490
        %v507 = vsel %vm498, %v476, %v491
        %v508 = vsel %vm498, %v477, %v492
        %v509 = vsel %vm498, %v478, %v493
        %v510 = vsel %vm498, %v479, %v494
        %v511 = vsel %vm498, %v480, %v495
        %v512 = vsel %vm498, %v481, %v496
        %v513 = vsel %vm498, %v482, %v497
        %v514 = vsel %vm498, %v483, %v468
        %v515 = vsel %vm498, %v484, %v469
        %v516 = vsel %vm498, %v485, %v470
        %v517 = vsel %vm498, %v486, %v471
        %v518 = vsel %vm498, %v487, %v472
        %v519 = vsel %vm498, %v488, %v473
        %v520 = vsel %vm498, %v489, %v474
        %v521 = vsel %vm498, %v490, %v475
        %v522 = vsel %vm498, %v491, %v476
        %v523 = vsel %vm498, %v492, %v477
        %v524 = vsel %vm498, %v493, %v478
        %v525 = vsel %vm498, %v494, %v479
        %v526 = vsel %vm498, %v495, %v480
        %v527 = vsel %vm498, %v496, %v481
        %v528 = vsel %vm498, %v497, %v482
        %v529 = vsel %vm270, 0.0, 0.0
        %v530 = vsel %vm271, 0.0, 0.0
        %v531 = vsel %vm270, %v499, 0.0
        %v532 = vsel %vm271, %v514, 0.0
        %v533 = vsel %vm270, %v500, 0.0
        %v534 = vsel %vm271, %v515, 0.0
        %v535 = vsel %vm270, %v501, 0.0
        %v536 = vsel %vm271, %v516, 0.0
        %v537 = vsel %vm270, %v502, 0.0
        %v538 = vsel %vm271, %v517, 0.0
        %v539 = vsel %vm270, %v503, 0.0
        %v540 = vsel %vm271, %v518, 0.0
        %v541 = vsel %vm270, %v504, 0.0
        %v542 = vsel %vm271, %v519, 0.0
        %v543 = vsel %vm270, %v505, 0.0
        %v544 = vsel %vm271, %v520, 0.0
        %v545 = vsel %vm270, %v506, 0.0
        %v546 = vsel %vm271, %v521, 0.0
        %v547 = vsel %vm270, %v507, 0.0
        %v548 = vsel %vm271, %v522, 0.0
        %v549 = vsel %vm270, %v508, 0.0
        %v550 = vsel %vm271, %v523, 0.0
        %v551 = vsel %vm270, %v509, 0.0
        %v552 = vsel %vm271, %v524, 0.0
        %v553 = vsel %vm270, %v510, 0.0
        %v554 = vsel %vm271, %v525, 0.0
        %v555 = vsel %vm270, %v511, 0.0
        %v556 = vsel %vm271, %v526, 0.0
        %v557 = vsel %vm270, %v512, 0.0
        %v558 = vsel %vm271, %v527, 0.0
        %v559 = vsel %vm270, %v513, 0.0
        %v560 = vsel %vm271, %v528, 0.0
        %v561 = vlaneseq
        %v562 = vshrl.u32 %v561, 7
        %v563 = vsub.s32 2, %v562
        %v564 = vrot.slane %v251, %v563
        %v565 = vmul.f32 %v529, %v564
        %v566 = vmul.f32 %v530, %v564
        %v567 = vmul.f32 %v531, %v564
        %v568 = vmul.f32 %v532, %v564
        %v569 = vmul.f32 %v533, %v564
        %v570 = vmul.f32 %v534, %v564
        %v571 = vmul.f32 %v535, %v564
        %v572 = vmul.f32 %v536, %v564
        %v573 = vmul.f32 %v537, %v564
        %v574 = vmul.f32 %v538, %v564
        %v575 = vmul.f32 %v539, %v564
        %v576 = vmul.f32 %v540, %v564
        %v577 = vmul.f32 %v541, %v564
        %v578 = vmul.f32 %v542, %v564
        %v579 = vmul.f32 %v543, %v564
        %v580 = vmul.f32 %v544, %v564
        %v581 = vmul.f32 %v545, %v564
        %v582 = vmul.f32 %v546, %v564
        %v583 = vmul.f32 %v547, %v564
        %v584 = vmul.f32 %v548, %v564
        %v585 = vmul.f32 %v549, %v564
        %v586 = vmul.f32 %v550, %v564
        %v587 = vmul.f32 %v551, %v564
        %v588 = vmul.f32 %v552, %v564
        %v589 = vmul.f32 %v553, %v564
        %v590 = vmul.f32 %v554, %v564
        %v591 = vmul.f32 %v555, %v564
        %v592 = vmul.f32 %v556, %v564
        %v593 = vmul.f32 %v557, %v564
        %v594 = vmul.f32 %v558, %v564
        %v595 = vmul.f32 %v559, %v564
        %v596 = vmul.f32 %v560, %v564
        %v597 = vadd.f32 %v436, %v565
        %v598 = vadd.f32 %v437, %v566
        %v599 = vadd.f32 %v438, %v567
        %v600 = vadd.f32 %v439, %v568
        %v601 = vadd.f32 %v440, %v569
        %v602 = vadd.f32 %v441, %v570
        %v603 = vadd.f32 %v442, %v571
        %v604 = vadd.f32 %v443, %v572
        %v605 = vadd.f32 %v444, %v573
        %v606 = vadd.f32 %v445, %v574
        %v607 = vadd.f32 %v446, %v575
        %v608 = vadd.f32 %v447, %v576
        %v609 = vadd.f32 %v448, %v577
        %v610 = vadd.f32 %v449, %v578
        %v611 = vadd.f32 %v450, %v579
        %v612 = vadd.f32 %v451, %v580
        %v613 = vadd.f32 %v452, %v581
        %v614 = vadd.f32 %v453, %v582
        %v615 = vadd.f32 %v454, %v583
        %v616 = vadd.f32 %v455, %v584
        %v617 = vadd.f32 %v456, %v585
        %v618 = vadd.f32 %v457, %v586
        %v619 = vadd.f32 %v458, %v587
        %v620 = vadd.f32 %v459, %v588
        %v621 = vadd.f32 %v460, %v589
        %v622 = vadd.f32 %v461, %v590
        %v623 = vadd.f32 %v462, %v591
        %v624 = vadd.f32 %v463, %v592
        %v625 = vadd.f32 %v464, %v593
        %v626 = vadd.f32 %v465, %v594
        %v627 = vadd.f32 %v466, %v595
        %v628 = vadd.f32 %v467, %v596
        %v629 = vrot.slane %v249, 7
        %v630 = vrot.slane %v250, 7
        %v631 = vsel %vm302, %v629, %v630
        %v632 = vsel %vm302, %v630, %v629
        %v633 = vsel %vm262, %v632, 0.0
        %v634 = vsel %vm263, %v631, 0.0
        %v635 = vlaneseq
        %v636 = vshrl.u32 %v635, 7
        %v637 = vsub.s32 3, %v636
        %v638 = vrot.slane %v251, %v637
        %v639 = vmul.f32 %v335, %v638
        %v640 = vmul.f32 %v336, %v638
        %v641 = vmul.f32 %v337, %v638
        %v642 = vmul.f32 %v338, %v638
        %v643 = vmul.f32 %v339, %v638
        %v644 = vmul.f32 %v340, %v638
        %v645 = vmul.f32 %v341, %v638
        %v646 = vmul.f32 %v342, %v638
        %v647 = vmul.f32 %v343, %v638
        %v648 = vmul.f32 %v344, %v638
        %v649 = vmul.f32 %v345, %v638
        %v650 = vmul.f32 %v346, %v638
        %v651 = vmul.f32 %v347, %v638
        %v652 = vmul.f32 %v348, %v638
        %v653 = vmul.f32 %v349, %v638
        %v654 = vmul.f32 %v350, %v638
        %v655 = vmul.f32 %v351, %v638
        %v656 = vmul.f32 %v352, %v638
        %v657 = vmul.f32 %v353, %v638
        %v658 = vmul.f32 %v354, %v638
        %v659 = vmul.f32 %v355, %v638
        %v660 = vmul.f32 %v356, %v638
        %v661 = vmul.f32 %v357, %v638
        %v662 = vmul.f32 %v358, %v638
        %v663 = vmul.f32 %v359, %v638
        %v664 = vmul.f32 %v360, %v638
        %v665 = vmul.f32 %v361, %v638
        %v666 = vmul.f32 %v362, %v638
        %v667 = vmul.f32 %v363, %v638
        %v668 = vmul.f32 %v364, %v638
        %v669 = vmul.f32 %v633, %v638
        %v670 = vmul.f32 %v634, %v638
        %v671 = vadd.f32 %v597, %v639
        %v672 = vadd.f32 %v598, %v640
        %v673 = vadd.f32 %v599, %v641
        %v674 = vadd.f32 %v600, %v642
        %v675 = vadd.f32 %v601, %v643
        %v676 = vadd.f32 %v602, %v644
        %v677 = vadd.f32 %v603, %v645
        %v678 = vadd.f32 %v604, %v646
        %v679 = vadd.f32 %v605, %v647
        %v680 = vadd.f32 %v606, %v648
        %v681 = vadd.f32 %v607, %v649
        %v682 = vadd.f32 %v608, %v650
        %v683 = vadd.f32 %v609, %v651
        %v684 = vadd.f32 %v610, %v652
        %v685 = vadd.f32 %v611, %v653
        %v686 = vadd.f32 %v612, %v654
        %v687 = vadd.f32 %v613, %v655
        %v688 = vadd.f32 %v614, %v656
        %v689 = vadd.f32 %v615, %v657
        %v690 = vadd.f32 %v616, %v658
        %v691 = vadd.f32 %v617, %v659
        %v692 = vadd.f32 %v618, %v660
        %v693 = vadd.f32 %v619, %v661
        %v694 = vadd.f32 %v620, %v662
        %v695 = vadd.f32 %v621, %v663
        %v696 = vadd.f32 %v622, %v664
        %v697 = vadd.f32 %v623, %v665
        %v698 = vadd.f32 %v624, %v666
        %v699 = vadd.f32 %v625, %v667
        %v700 = vadd.f32 %v626, %v668
        %v701 = vadd.f32 %v627, %v669
        %v702 = vadd.f32 %v628, %v670
        %v703 = vlaneseq
        %v704 = vshrl.u32 %v703, 7
        %v705 = vsub.s32 4, %v704
        %v706 = vrot.slane %v251, %v705
        %v707 = vmul.f32 %v219, %v706
        %v708 = vmul.f32 %v220, %v706
        %v709 = vmul.f32 %v221, %v706
        %v710 = vmul.f32 %v222, %v706
        %v711 = vmul.f32 %v223, %v706
        %v712 = vmul.f32 %v224, %v706
        %v713 = vmul.f32 %v225, %v706
        %v714 = vmul.f32 %v226, %v706
        %v715 = vmul.f32 %v227, %v706
        %v716 = vmul.f32 %v228, %v706
        %v717 = vmul.f32 %v229, %v706
        %v718 = vmul.f32 %v230, %v706
        %v719 = vmul.f32 %v231, %v706
        %v720 = vmul.f32 %v232, %v706
        %v721 = vmul.f32 %v233, %v706
        %v722 = vmul.f32 %v234, %v706
        %v723 = vmul.f32 %v235, %v706
        %v724 = vmul.f32 %v236, %v706
        %v725 = vmul.f32 %v237, %v706
        %v726 = vmul.f32 %v238, %v706
        %v727 = vmul.f32 %v239, %v706
        %v728 = vmul.f32 %v240, %v706
        %v729 = vmul.f32 %v241, %v706
        %v730 = vmul.f32 %v242, %v706
        %v731 = vmul.f32 %v243, %v706
        %v732 = vmul.f32 %v244, %v706
        %v733 = vmul.f32 %v245, %v706
        %v734 = vmul.f32 %v246, %v706
        %v735 = vmul.f32 %v247, %v706
        %v736 = vmul.f32 %v248, %v706
        %v737 = vmul.f32 %v249, %v706
        %v738 = vmul.f32 %v250, %v706
        %v739 = vadd.f32 %v671, %v707
        %v740 = vadd.f32 %v672, %v708
        %v741 = vadd.f32 %v673, %v709
        %v742 = vadd.f32 %v674, %v710
        %v743 = vadd.f32 %v675, %v711
        %v744 = vadd.f32 %v676, %v712
        %v745 = vadd.f32 %v677, %v713
        %v746 = vadd.f32 %v678, %v714
        %v747 = vadd.f32 %v679, %v715
        %v748 = vadd.f32 %v680, %v716
        %v749 = vadd.f32 %v681, %v717
        %v750 = vadd.f32 %v682, %v718
        %v751 = vadd.f32 %v683, %v719
        %v752 = vadd.f32 %v684, %v720
        %v753 = vadd.f32 %v685, %v721
        %v754 = vadd.f32 %v686, %v722
        %v755 = vadd.f32 %v687, %v723
        %v756 = vadd.f32 %v688, %v724
        %v757 = vadd.f32 %v689, %v725
        %v758 = vadd.f32 %v690, %v726
        %v759 = vadd.f32 %v691, %v727
        %v760 = vadd.f32 %v692, %v728
        %v761 = vadd.f32 %v693, %v729
        %v762 = vadd.f32 %v694, %v730
        %v763 = vadd.f32 %v695, %v731
        %v764 = vadd.f32 %v696, %v732
        %v765 = vadd.f32 %v697, %v733
        %v766 = vadd.f32 %v698, %v734
        %v767 = vadd.f32 %v699, %v735
        %v768 = vadd.f32 %v700, %v736
        %v769 = vadd.f32 %v701, %v737
        %v770 = vadd.f32 %v702, %v738
        %v771 = vrot.slane %v249, 1
        %v772 = vrot.slane %v250, 1
        %v773 = vsel %vm498, %v771, %v772
        %v774 = vsel %vm498, %v772, %v771
        %v775 = vsel %vm270, %v773, 0.0
        %v776 = vsel %vm271, %v774, 0.0
        %v777 = vlaneseq
        %v778 = vshrl.u32 %v777, 7
        %v779 = vsub.s32 5, %v778
        %v780 = vrot.slane %v251, %v779
        %v781 = vmul.f32 %v531, %v780
        %v782 = vmul.f32 %v532, %v780
        %v783 = vmul.f32 %v533, %v780
        %v784 = vmul.f32 %v534, %v780
        %v785 = vmul.f32 %v535, %v780
        %v786 = vmul.f32 %v536, %v780
        %v787 = vmul.f32 %v537, %v780
        %v788 = vmul.f32 %v538, %v780
        %v789 = vmul.f32 %v539, %v780
        %v790 = vmul.f32 %v540, %v780
        %v791 = vmul.f32 %v541, %v780
        %v792 = vmul.f32 %v542, %v780
        %v793 = vmul.f32 %v543, %v780
        %v794 = vmul.f32 %v544, %v780
        %v795 = vmul.f32 %v545, %v780
        %v796 = vmul.f32 %v546, %v780
        %v797 = vmul.f32 %v547, %v780
        %v798 = vmul.f32 %v548, %v780
        %v799 = vmul.f32 %v549, %v780
        %v800 = vmul.f32 %v550, %v780
        %v801 = vmul.f32 %v551, %v780
        %v802 = vmul.f32 %v552, %v780
        %v803 = vmul.f32 %v553, %v780
        %v804 = vmul.f32 %v554, %v780
        %v805 = vmul.f32 %v555, %v780
        %v806 = vmul.f32 %v556, %v780
        %v807 = vmul.f32 %v557, %v780
        %v808 = vmul.f32 %v558, %v780
        %v809 = vmul.f32 %v559, %v780
        %v810 = vmul.f32 %v560, %v780
        %v811 = vmul.f32 %v775, %v780
        %v812 = vmul.f32 %v776, %v780
        %v813 = vadd.f32 %v739, %v781
        %v814 = vadd.f32 %v740, %v782
        %v815 = vadd.f32 %v741, %v783
        %v816 = vadd.f32 %v742, %v784
        %v817 = vadd.f32 %v743, %v785
        %v818 = vadd.f32 %v744, %v786
        %v819 = vadd.f32 %v745, %v787
        %v820 = vadd.f32 %v746, %v788
        %v821 = vadd.f32 %v747, %v789
        %v822 = vadd.f32 %v748, %v790
        %v823 = vadd.f32 %v749, %v791
        %v824 = vadd.f32 %v750, %v792
        %v825 = vadd.f32 %v751, %v793
        %v826 = vadd.f32 %v752, %v794
        %v827 = vadd.f32 %v753, %v795
        %v828 = vadd.f32 %v754, %v796
        %v829 = vadd.f32 %v755, %v797
        %v830 = vadd.f32 %v756, %v798
        %v831 = vadd.f32 %v757, %v799
        %v832 = vadd.f32 %v758, %v800
        %v833 = vadd.f32 %v759, %v801
        %v834 = vadd.f32 %v760, %v802
        %v835 = vadd.f32 %v761, %v803
        %v836 = vadd.f32 %v762, %v804
        %v837 = vadd.f32 %v763, %v805
        %v838 = vadd.f32 %v764, %v806
        %v839 = vadd.f32 %v765, %v807
        %v840 = vadd.f32 %v766, %v808
        %v841 = vadd.f32 %v767, %v809
        %v842 = vadd.f32 %v768, %v810
        %v843 = vadd.f32 %v769, %v811
        %v844 = vadd.f32 %v770, %v812
        %v845 = vlaneseq
        %v846 = vshrl.u32 %v845, 7
        %v847 = vsub.s32 6, %v846
        %v848 = vrot.slane %v251, %v847
        %v849 = vmul.f32 %v337, %v848
        %v850 = vmul.f32 %v338, %v848
        %v851 = vmul.f32 %v339, %v848
        %v852 = vmul.f32 %v340, %v848
        %v853 = vmul.f32 %v341, %v848
        %v854 = vmul.f32 %v342, %v848
        %v855 = vmul.f32 %v343, %v848
        %v856 = vmul.f32 %v344, %v848
        %v857 = vmul.f32 %v345, %v848
        %v858 = vmul.f32 %v346, %v848
        %v859 = vmul.f32 %v347, %v848
        %v860 = vmul.f32 %v348, %v848
        %v861 = vmul.f32 %v349, %v848
        %v862 = vmul.f32 %v350, %v848
        %v863 = vmul.f32 %v351, %v848
        %v864 = vmul.f32 %v352, %v848
        %v865 = vmul.f32 %v353, %v848
        %v866 = vmul.f32 %v354, %v848
        %v867 = vmul.f32 %v355, %v848
        %v868 = vmul.f32 %v356, %v848
        %v869 = vmul.f32 %v357, %v848
        %v870 = vmul.f32 %v358, %v848
        %v871 = vmul.f32 %v359, %v848
        %v872 = vmul.f32 %v360, %v848
        %v873 = vmul.f32 %v361, %v848
        %v874 = vmul.f32 %v362, %v848
        %v875 = vmul.f32 %v363, %v848
        %v876 = vmul.f32 %v364, %v848
        %v877 = vmul.f32 %v633, %v848
        %v878 = vmul.f32 %v634, %v848
        %v879 = vmul.f32 %v333, %v848
        %v880 = vmul.f32 %v334, %v848
        %v881 = vadd.f32 %v813, %v849
        %v882 = vadd.f32 %v814, %v850
        %v883 = vadd.f32 %v815, %v851
        %v884 = vadd.f32 %v816, %v852
        %v885 = vadd.f32 %v817, %v853
        %v886 = vadd.f32 %v818, %v854
        %v887 = vadd.f32 %v819, %v855
        %v888 = vadd.f32 %v820, %v856
        %v889 = vadd.f32 %v821, %v857
        %v890 = vadd.f32 %v822, %v858
        %v891 = vadd.f32 %v823, %v859
        %v892 = vadd.f32 %v824, %v860
        %v893 = vadd.f32 %v825, %v861
        %v894 = vadd.f32 %v826, %v862
        %v895 = vadd.f32 %v827, %v863
        %v896 = vadd.f32 %v828, %v864
        %v897 = vadd.f32 %v829, %v865
        %v898 = vadd.f32 %v830, %v866
        %v899 = vadd.f32 %v831, %v867
        %v900 = vadd.f32 %v832, %v868
        %v901 = vadd.f32 %v833, %v869
        %v902 = vadd.f32 %v834, %v870
        %v903 = vadd.f32 %v835, %v871
        %v904 = vadd.f32 %v836, %v872
        %v905 = vadd.f32 %v837, %v873
        %v906 = vadd.f32 %v838, %v874
        %v907 = vadd.f32 %v839, %v875
        %v908 = vadd.f32 %v840, %v876
        %v909 = vadd.f32 %v841, %v877
        %v910 = vadd.f32 %v842, %v878
        %v911 = vadd.f32 %v843, %v879
        %v912 = vadd.f32 %v844, %v880
        %v913 = vlaneseq
        %v914 = vshrl.u32 %v913, 7
        %v915 = vsub.s32 7, %v914
        %v916 = vrot.slane %v251, %v915
        %v917 = vmul.f32 %v221, %v916
        %v918 = vmul.f32 %v222, %v916
        %v919 = vmul.f32 %v223, %v916
        %v920 = vmul.f32 %v224, %v916
        %v921 = vmul.f32 %v225, %v916
        %v922 = vmul.f32 %v226, %v916
        %v923 = vmul.f32 %v227, %v916
        %v924 = vmul.f32 %v228, %v916
        %v925 = vmul.f32 %v229, %v916
        %v926 = vmul.f32 %v230, %v916
        %v927 = vmul.f32 %v231, %v916
        %v928 = vmul.f32 %v232, %v916
        %v929 = vmul.f32 %v233, %v916
        %v930 = vmul.f32 %v234, %v916
        %v931 = vmul.f32 %v235, %v916
        %v932 = vmul.f32 %v236, %v916
        %v933 = vmul.f32 %v237, %v916
        %v934 = vmul.f32 %v238, %v916
        %v935 = vmul.f32 %v239, %v916
        %v936 = vmul.f32 %v240, %v916
        %v937 = vmul.f32 %v241, %v916
        %v938 = vmul.f32 %v242, %v916
        %v939 = vmul.f32 %v243, %v916
        %v940 = vmul.f32 %v244, %v916
        %v941 = vmul.f32 %v245, %v916
        %v942 = vmul.f32 %v246, %v916
        %v943 = vmul.f32 %v247, %v916
        %v944 = vmul.f32 %v248, %v916
        %v945 = vmul.f32 %v249, %v916
        %v946 = vmul.f32 %v250, %v916
        %v947 = vmul.f32 %v916, 0.0
        %v948 = vadd.f32 %v881, %v917
        %v949 = vadd.f32 %v882, %v918
        %v950 = vadd.f32 %v883, %v919
        %v951 = vadd.f32 %v884, %v920
        %v952 = vadd.f32 %v885, %v921
        %v953 = vadd.f32 %v886, %v922
        %v954 = vadd.f32 %v887, %v923
        %v955 = vadd.f32 %v888, %v924
        %v956 = vadd.f32 %v889, %v925
        %v957 = vadd.f32 %v890, %v926
        %v958 = vadd.f32 %v891, %v927
        %v959 = vadd.f32 %v892, %v928
        %v960 = vadd.f32 %v893, %v929
        %v961 = vadd.f32 %v894, %v930
        %v962 = vadd.f32 %v895, %v931
        %v963 = vadd.f32 %v896, %v932
        %v964 = vadd.f32 %v897, %v933
        %v965 = vadd.f32 %v898, %v934
        %v966 = vadd.f32 %v899, %v935
        %v967 = vadd.f32 %v900, %v936
        %v968 = vadd.f32 %v901, %v937
        %v969 = vadd.f32 %v902, %v938
        %v970 = vadd.f32 %v903, %v939
        %v971 = vadd.f32 %v904, %v940
        %v972 = vadd.f32 %v905, %v941
        %v973 = vadd.f32 %v906, %v942
        %v974 = vadd.f32 %v907, %v943
        %v975 = vadd.f32 %v908, %v944
        %v976 = vadd.f32 %v909, %v945
        %v977 = vadd.f32 %v910, %v946
        %v978 = vadd.f32 %v911, %v947
        %v979 = vadd.f32 %v912, %v947
        %v980 = vlaneseq
        %v981 = vshrl.u32 %v980, 7
        %v982 = vsub.s32 0, %v981
        %v983 = vrot.slane %v252, %v982
        %v984 = vmul.f32 %v533, %v983
        %v985 = vmul.f32 %v534, %v983
        %v986 = vmul.f32 %v535, %v983
        %v987 = vmul.f32 %v536, %v983
        %v988 = vmul.f32 %v537, %v983
        %v989 = vmul.f32 %v538, %v983
        %v990 = vmul.f32 %v539, %v983
        %v991 = vmul.f32 %v540, %v983
        %v992 = vmul.f32 %v541, %v983
        %v993 = vmul.f32 %v542, %v983
        %v994 = vmul.f32 %v543, %v983
        %v995 = vmul.f32 %v544, %v983
        %v996 = vmul.f32 %v545, %v983
        %v997 = vmul.f32 %v546, %v983
        %v998 = vmul.f32 %v547, %v983
        %v999 = vmul.f32 %v548, %v983
        %v1000 = vmul.f32 %v549, %v983
        %v1001 = vmul.f32 %v550, %v983
        %v1002 = vmul.f32 %v551, %v983
        %v1003 = vmul.f32 %v552, %v983
        %v1004 = vmul.f32 %v553, %v983
        %v1005 = vmul.f32 %v554, %v983
        %v1006 = vmul.f32 %v555, %v983
        %v1007 = vmul.f32 %v556, %v983
        %v1008 = vmul.f32 %v557, %v983
        %v1009 = vmul.f32 %v558, %v983
        %v1010 = vmul.f32 %v559, %v983
        %v1011 = vmul.f32 %v560, %v983
        %v1012 = vmul.f32 %v775, %v983
        %v1013 = vmul.f32 %v776, %v983
        %v1014 = vmul.f32 %v529, %v983
        %v1015 = vmul.f32 %v530, %v983
        %v1016 = vadd.f32 %v948, %v984
        %v1017 = vadd.f32 %v949, %v985
        %v1018 = vadd.f32 %v950, %v986
        %v1019 = vadd.f32 %v951, %v987
        %v1020 = vadd.f32 %v952, %v988
        %v1021 = vadd.f32 %v953, %v989
        %v1022 = vadd.f32 %v954, %v990
        %v1023 = vadd.f32 %v955, %v991
        %v1024 = vadd.f32 %v956, %v992
        %v1025 = vadd.f32 %v957, %v993
        %v1026 = vadd.f32 %v958, %v994
        %v1027 = vadd.f32 %v959, %v995
        %v1028 = vadd.f32 %v960, %v996
        %v1029 = vadd.f32 %v961, %v997
        %v1030 = vadd.f32 %v962, %v998
        %v1031 = vadd.f32 %v963, %v999
        %v1032 = vadd.f32 %v964, %v1000
        %v1033 = vadd.f32 %v965, %v1001
        %v1034 = vadd.f32 %v966, %v1002
        %v1035 = vadd.f32 %v967, %v1003
        %v1036 = vadd.f32 %v968, %v1004
        %v1037 = vadd.f32 %v969, %v1005
        %v1038 = vadd.f32 %v970, %v1006
        %v1039 = vadd.f32 %v971, %v1007
        %v1040 = vadd.f32 %v972, %v1008
        %v1041 = vadd.f32 %v973, %v1009
        %v1042 = vadd.f32 %v974, %v1010
        %v1043 = vadd.f32 %v975, %v1011
        %v1044 = vadd.f32 %v976, %v1012
        %v1045 = vadd.f32 %v977, %v1013
        %v1046 = vadd.f32 %v978, %v1014
        %v1047 = vadd.f32 %v979, %v1015
        %v1048 = vpack.c.bf16 %v1017, %v1016
        %v1049 = vpack.c.bf16 %v1019, %v1018
        %v1050 = vpack.c.bf16 %v1021, %v1020
        %v1051 = vpack.c.bf16 %v1023, %v1022
        %v1052 = vpack.c.bf16 %v1025, %v1024
        %v1053 = vpack.c.bf16 %v1027, %v1026
        %v1054 = vpack.c.bf16 %v1029, %v1028
        %v1055 = vpack.c.bf16 %v1031, %v1030
        %v1056 = vpack.c.bf16 %v1033, %v1032
        %v1057 = vpack.c.bf16 %v1035, %v1034
        %v1058 = vpack.c.bf16 %v1037, %v1036
        %v1059 = vpack.c.bf16 %v1039, %v1038
        %v1060 = vpack.c.bf16 %v1041, %v1040
        %v1061 = vpack.c.bf16 %v1043, %v1042
        %v1062 = vpack.c.bf16 %v1045, %v1044
        %v1063 = vpack.c.bf16 %v1047, %v1046
        %v1064 = vld [vmem:[#allocation7] sm:$0xff]
        %v1065 = vld [vmem:[#allocation7 + $0x8] sm:$0xff]
        %v1066 = vld [vmem:[#allocation7 + $0x10] sm:$0xff]
        %v1067 = vld [vmem:[#allocation7 + $0x18] sm:$0xff]
        %v1068 = vld [vmem:[#allocation7 + $0x20] sm:$0xff]
        %v1069 = vld [vmem:[#allocation7 + $0x28] sm:$0xff]
        %v1070 = vld [vmem:[#allocation7 + $0x30] sm:$0xff]
        %v1071 = vld [vmem:[#allocation7 + $0x38] sm:$0xff]
        %v1072 = vld [vmem:[#allocation7 + $0x40] sm:$0xff]
        %v1073 = vld [vmem:[#allocation7 + $0x48] sm:$0xff]
        %v1074 = vld [vmem:[#allocation7 + $0x50] sm:$0xff]
        %v1075 = vld [vmem:[#allocation7 + $0x58] sm:$0xff]
        %v1076 = vld [vmem:[#allocation7 + $0x60] sm:$0xff]
        %v1077 = vld [vmem:[#allocation7 + $0x68] sm:$0xff]
        %v1078 = vld [vmem:[#allocation7 + $0x70] sm:$0xff]
        %v1079 = vld [vmem:[#allocation7 + $0x78] sm:$0xff]
        %v1080 = vld [vmem:[#allocation7 + $0x80] sm:$0xff]
        %v1081 = vld [vmem:[#allocation7 + $0x88] sm:$0xff]
        %v1082 = vld [vmem:[#allocation7 + $0x90] sm:$0xff]
        %v1083 = vld [vmem:[#allocation7 + $0x98] sm:$0xff]
        %v1084 = vld [vmem:[#allocation7 + $0xa0] sm:$0xff]
        %v1085 = vld [vmem:[#allocation7 + $0xa8] sm:$0xff]
        %v1086 = vld [vmem:[#allocation7 + $0xb0] sm:$0xff]
        %v1087 = vld [vmem:[#allocation7 + $0xb8] sm:$0xff]
        %v1088 = vld [vmem:[#allocation7 + $0xc0] sm:$0xff]
        %v1089 = vld [vmem:[#allocation7 + $0xc8] sm:$0xff]
        %v1090 = vld [vmem:[#allocation7 + $0xd0] sm:$0xff]
        %v1091 = vld [vmem:[#allocation7 + $0xd8] sm:$0xff]
        %v1092 = vld [vmem:[#allocation7 + $0xe0] sm:$0xff]
        %v1093 = vld [vmem:[#allocation7 + $0xe8] sm:$0xff]
        %v1094 = vld [vmem:[#allocation7 + $0xf0] sm:$0xff]
        %v1095 = vld [vmem:[#allocation7 + $0xf8] sm:$0xff]
        %v1096 = vpack.c.bf16 %v1066, %v1064
        %v1097 = vpack.c.bf16 %v1067, %v1065
        %v1098 = vpack.c.bf16 %v1070, %v1068
        %v1099 = vpack.c.bf16 %v1071, %v1069
        %v1100 = vpack.c.bf16 %v1074, %v1072
        %v1101 = vpack.c.bf16 %v1075, %v1073
        %v1102 = vpack.c.bf16 %v1078, %v1076
        %v1103 = vpack.c.bf16 %v1079, %v1077
        %v1104 = vpack.c.bf16 %v1082, %v1080
        %v1105 = vpack.c.bf16 %v1083, %v1081
        %v1106 = vpack.c.bf16 %v1086, %v1084
        %v1107 = vpack.c.bf16 %v1087, %v1085
        %v1108 = vpack.c.bf16 %v1090, %v1088
        %v1109 = vpack.c.bf16 %v1091, %v1089
        %v1110 = vpack.c.bf16 %v1094, %v1092
        %v1111 = vpack.c.bf16 %v1095, %v1093
        %1112 = vmatprep.subr.bf16.mxu0 %v1097
        %1113 = vmatpush1.bf16.msra.mxu0 %v1096
        %1114 = vmatprep.subr.bf16.mxu0 %v1099
        %1115 = vmatpush1.bf16.msra.mxu0 %v1098
        %1116 = vmatprep.subr.bf16.mxu0 %v1101
        %1117 = vmatpush1.bf16.msra.mxu0 %v1100
        %1118 = vmatprep.subr.bf16.mxu0 %v1103
        %1119 = vmatpush1.bf16.msra.mxu0 %v1102
        %1120 = vmatprep.subr.bf16.mxu0 %v1105
        %1121 = vmatpush1.bf16.msra.mxu0 %v1104
        %1122 = vmatprep.subr.bf16.mxu0 %v1107
        %1123 = vmatpush1.bf16.msra.mxu0 %v1106
        %1124 = vmatprep.subr.bf16.mxu0 %v1109
        %1125 = vmatpush1.bf16.msra.mxu0 %v1108
        %1126 = vmatprep.subr.bf16.mxu0 %v1111
        %1127 = vmatpush1.bf16.msra.mxu0 %v1110
        %1128 = vmatprep.subr.bf16.mxu0 0
        %1129 = vmatpush1.bf16.msra.mxu0 0
        %1130 = vmatprep.subr.bf16.mxu0 0
        %1131 = vmatpush1.bf16.msra.mxu0 0
        %1132 = vmatprep.subr.bf16.mxu0 0
        %1133 = vmatpush1.bf16.msra.mxu0 0
        %1134 = vmatprep.subr.bf16.mxu0 0
        %1135 = vmatpush1.bf16.msra.mxu0 0
        %1136 = vmatprep.subr.bf16.mxu0 0
        %1137 = vmatpush1.bf16.msra.mxu0 0
        %1138 = vmatprep.subr.bf16.mxu0 0
        %1139 = vmatpush1.bf16.msra.mxu0 0
        %1140 = vmatprep.subr.bf16.mxu0 0
        %1141 = vmatpush1.bf16.msra.mxu0 0
        %1142 = vmatprep.subr.bf16.mxu0 0
        %1143 = vmatpush1.bf16.msra.mxu0 0
        %1144 = vmatprep.mubr.bf16.mxu0 0
        %1145 = vmatmul.mubr.bf16.gmra.mrb[0].mxu0 %v1048
        %v1146 = vpop.f32.mrb[0].mxu0
        %v1147 = vadd.f32 0.0, %v1146
        %v1148 = vpop.f32.mrb[0].mxu0
        %v1149 = vadd.f32 0.0, %v1148
        %v1150 = vpop.f32.mrb[0].mxu0
        %v1151 = vadd.f32 0.0, %v1150
        %v1152 = vpop.f32.mrb[0].mxu0
        %v1153 = vadd.f32 0.0, %v1152
        %1154 = vmatprep.mubr.bf16.mxu0 0
        %1155 = vmatmul.mubr.bf16.gmra.mrb[0].mxu0 %v1049
        %v1156 = vpop.f32.mrb[0].mxu0
        %v1157 = vadd.f32 0.0, %v1156
        %v1158 = vpop.f32.mrb[0].mxu0
        %v1159 = vadd.f32 0.0, %v1158
        %v1160 = vpop.f32.mrb[0].mxu0
        %v1161 = vadd.f32 0.0, %v1160
        %v1162 = vpop.f32.mrb[0].mxu0
        %v1163 = vadd.f32 0.0, %v1162
        %1164 = vmatprep.mubr.bf16.mxu0 0
        %1165 = vmatmul.mubr.bf16.gmra.mrb[0].mxu0 %v1050
        %v1166 = vpop.f32.mrb[0].mxu0
        %v1167 = vadd.f32 0.0, %v1166
        %v1168 = vpop.f32.mrb[0].mxu0
        %v1169 = vadd.f32 0.0, %v1168
        %v1170 = vpop.f32.mrb[0].mxu0
        %v1171 = vadd.f32 0.0, %v1170
        %v1172 = vpop.f32.mrb[0].mxu0
        %v1173 = vadd.f32 0.0, %v1172
        %1174 = vmatprep.mubr.bf16.mxu0 0
        %1175 = vmatmul.mubr.bf16.gmra.mrb[0].mxu0 %v1051
        %v1176 = vpop.f32.mrb[0].mxu0
        %v1177 = vadd.f32 0.0, %v1176
        %v1178 = vpop.f32.mrb[0].mxu0
        %v1179 = vadd.f32 0.0, %v1178
        %v1180 = vpop.f32.mrb[0].mxu0
        %v1181 = vadd.f32 0.0, %v1180
        %v1182 = vpop.f32.mrb[0].mxu0
        %v1183 = vadd.f32 0.0, %v1182
        %1184 = vmatprep.mubr.bf16.mxu0 0
        %1185 = vmatmul.mubr.bf16.gmra.mrb[0].mxu0 %v1052
        %v1186 = vpop.f32.mrb[0].mxu0
        %v1187 = vadd.f32 0.0, %v1186
        %v1188 = vpop.f32.mrb[0].mxu0
        %v1189 = vadd.f32 0.0, %v1188
        %v1190 = vpop.f32.mrb[0].mxu0
        %v1191 = vadd.f32 0.0, %v1190
        %v1192 = vpop.f32.mrb[0].mxu0
        %v1193 = vadd.f32 0.0, %v1192
        %1194 = vmatprep.mubr.bf16.mxu0 0
        %1195 = vmatmul.mubr.bf16.gmra.mrb[0].mxu0 %v1053
        %v1196 = vpop.f32.mrb[0].mxu0
        %v1197 = vadd.f32 0.0, %v1196
        %v1198 = vpop.f32.mrb[0].mxu0
        %v1199 = vadd.f32 0.0, %v1198
        %v1200 = vpop.f32.mrb[0].mxu0
        %v1201 = vadd.f32 0.0, %v1200
        %v1202 = vpop.f32.mrb[0].mxu0
        %v1203 = vadd.f32 0.0, %v1202
        %1204 = vmatprep.mubr.bf16.mxu0 0
        %1205 = vmatmul.mubr.bf16.gmra.mrb[0].mxu0 %v1054
        %v1206 = vpop.f32.mrb[0].mxu0
        %v1207 = vadd.f32 0.0, %v1206
        %v1208 = vpop.f32.mrb[0].mxu0
        %v1209 = vadd.f32 0.0, %v1208
        %v1210 = vpop.f32.mrb[0].mxu0
        %v1211 = vadd.f32 0.0, %v1210
        %v1212 = vpop.f32.mrb[0].mxu0
        %v1213 = vadd.f32 0.0, %v1212
        %1214 = vmatprep.mubr.bf16.mxu0 0
        %1215 = vmatmul.mubr.bf16.gmra.mrb[0].mxu0 %v1055
        %v1216 = vpop.f32.mrb[0].mxu0
        %v1217 = vadd.f32 0.0, %v1216
        %v1218 = vpop.f32.mrb[0].mxu0
        %v1219 = vadd.f32 0.0, %v1218
        %v1220 = vpop.f32.mrb[0].mxu0
        %v1221 = vadd.f32 0.0, %v1220
        %v1222 = vpop.f32.mrb[0].mxu0
        %v1223 = vadd.f32 0.0, %v1222
        %1224 = vmatprep.mubr.bf16.mxu0 0
        %1225 = vmatmul.mubr.bf16.gmra.mrb[0].mxu0 %v1056
        %v1226 = vpop.f32.mrb[0].mxu0
        %v1227 = vadd.f32 0.0, %v1226
        %v1228 = vpop.f32.mrb[0].mxu0
        %v1229 = vadd.f32 0.0, %v1228
        %v1230 = vpop.f32.mrb[0].mxu0
        %v1231 = vadd.f32 0.0, %v1230
        %v1232 = vpop.f32.mrb[0].mxu0
        %v1233 = vadd.f32 0.0, %v1232
        %1234 = vmatprep.mubr.bf16.mxu0 0
        %1235 = vmatmul.mubr.bf16.gmra.mrb[0].mxu0 %v1057
        %v1236 = vpop.f32.mrb[0].mxu0
        %v1237 = vadd.f32 0.0, %v1236
        %v1238 = vpop.f32.mrb[0].mxu0
        %v1239 = vadd.f32 0.0, %v1238
        %v1240 = vpop.f32.mrb[0].mxu0
        %v1241 = vadd.f32 0.0, %v1240
        %v1242 = vpop.f32.mrb[0].mxu0
        %v1243 = vadd.f32 0.0, %v1242
        %1244 = vmatprep.mubr.bf16.mxu0 0
        %1245 = vmatmul.mubr.bf16.gmra.mrb[0].mxu0 %v1058
        %v1246 = vpop.f32.mrb[0].mxu0
        %v1247 = vadd.f32 0.0, %v1246
        %v1248 = vpop.f32.mrb[0].mxu0
        %v1249 = vadd.f32 0.0, %v1248
        %v1250 = vpop.f32.mrb[0].mxu0
        %v1251 = vadd.f32 0.0, %v1250
        %v1252 = vpop.f32.mrb[0].mxu0
        %v1253 = vadd.f32 0.0, %v1252
        %1254 = vmatprep.mubr.bf16.mxu0 0
        %1255 = vmatmul.mubr.bf16.gmra.mrb[0].mxu0 %v1059
        %v1256 = vpop.f32.mrb[0].mxu0
        %v1257 = vadd.f32 0.0, %v1256
        %v1258 = vpop.f32.mrb[0].mxu0
        %v1259 = vadd.f32 0.0, %v1258
        %v1260 = vpop.f32.mrb[0].mxu0
        %v1261 = vadd.f32 0.0, %v1260
        %v1262 = vpop.f32.mrb[0].mxu0
        %v1263 = vadd.f32 0.0, %v1262
        %1264 = vmatprep.mubr.bf16.mxu0 0
        %1265 = vmatmul.mubr.bf16.gmra.mrb[0].mxu0 %v1060
        %v1266 = vpop.f32.mrb[0].mxu0
        %v1267 = vadd.f32 0.0, %v1266
        %v1268 = vpop.f32.mrb[0].mxu0
        %v1269 = vadd.f32 0.0, %v1268
        %v1270 = vpop.f32.mrb[0].mxu0
        %v1271 = vadd.f32 0.0, %v1270
        %v1272 = vpop.f32.mrb[0].mxu0
        %v1273 = vadd.f32 0.0, %v1272
        %1274 = vmatprep.mubr.bf16.mxu0 0
        %1275 = vmatmul.mubr.bf16.gmra.mrb[0].mxu0 %v1061
        %v1276 = vpop.f32.mrb[0].mxu0
        %v1277 = vadd.f32 0.0, %v1276
        %v1278 = vpop.f32.mrb[0].mxu0
        %v1279 = vadd.f32 0.0, %v1278
        %v1280 = vpop.f32.mrb[0].mxu0
        %v1281 = vadd.f32 0.0, %v1280
        %v1282 = vpop.f32.mrb[0].mxu0
        %v1283 = vadd.f32 0.0, %v1282
        %1284 = vmatprep.mubr.bf16.mxu0 0
        %1285 = vmatmul.mubr.bf16.gmra.mrb[0].mxu0 %v1062
        %v1286 = vpop.f32.mrb[0].mxu0
        %v1287 = vadd.f32 0.0, %v1286
        %v1288 = vpop.f32.mrb[0].mxu0
        %v1289 = vadd.f32 0.0, %v1288
        %v1290 = vpop.f32.mrb[0].mxu0
        %v1291 = vadd.f32 0.0, %v1290
        %v1292 = vpop.f32.mrb[0].mxu0
        %v1293 = vadd.f32 0.0, %v1292
        %1294 = vmatprep.mubr.bf16.mxu0 0
        %1295 = vmatmul.mubr.bf16.gmra.mrb[0].mxu0 %v1063
        %v1296 = vpop.f32.mrb[0].mxu0
        %v1297 = vadd.f32 0.0, %v1296
        %v1298 = vpop.f32.mrb[0].mxu0
        %v1299 = vadd.f32 0.0, %v1298
        %v1300 = vpop.f32.mrb[0].mxu0
        %v1301 = vadd.f32 0.0, %v1300
        %v1302 = vpop.f32.mrb[0].mxu0
        %v1303 = vadd.f32 0.0, %v1302
        %1304 = vdwg.mxu0
        %1305 = vst [vmem:[%s217] sm:$0xff] %v1147
        %1306 = vst [vmem:[%s217 + $0x8] sm:$0xff] %v1149
        %1307 = vst [vmem:[%s217 + $0x10] sm:$0xff] %v1151
        %1308 = vst [vmem:[%s217 + $0x18] sm:$0xff] %v1153
        %1309 = vst [vmem:[%s217 + $0x20] sm:$0xff] %v1157
        %1310 = vst [vmem:[%s217 + $0x28] sm:$0xff] %v1159
        %1311 = vst [vmem:[%s217 + $0x30] sm:$0xff] %v1161
        %1312 = vst [vmem:[%s217 + $0x38] sm:$0xff] %v1163
        %1313 = vst [vmem:[%s217 + $0x40] sm:$0xff] %v1167
        %1314 = vst [vmem:[%s217 + $0x48] sm:$0xff] %v1169
        %1315 = vst [vmem:[%s217 + $0x50] sm:$0xff] %v1171
        %1316 = vst [vmem:[%s217 + $0x58] sm:$0xff] %v1173
        %1317 = vst [vmem:[%s217 + $0x60] sm:$0xff] %v1177
        %1318 = vst [vmem:[%s217 + $0x68] sm:$0xff] %v1179
        %1319 = vst [vmem:[%s217 + $0x70] sm:$0xff] %v1181
        %1320 = vst [vmem:[%s217 + $0x78] sm:$0xff] %v1183
        %1321 = vst [vmem:[%s217 + $0x80] sm:$0xff] %v1187
        %1322 = vst [vmem:[%s217 + $0x88] sm:$0xff] %v1189
        %1323 = vst [vmem:[%s217 + $0x90] sm:$0xff] %v1191
        %1324 = vst [vmem:[%s217 + $0x98] sm:$0xff] %v1193
        %1325 = vst [vmem:[%s217 + $0xa0] sm:$0xff] %v1197
        %1326 = vst [vmem:[%s217 + $0xa8] sm:$0xff] %v1199
        %1327 = vst [vmem:[%s217 + $0xb0] sm:$0xff] %v1201
        %1328 = vst [vmem:[%s217 + $0xb8] sm:$0xff] %v1203
        %1329 = vst [vmem:[%s217 + $0xc0] sm:$0xff] %v1207
        %1330 = vst [vmem:[%s217 + $0xc8] sm:$0xff] %v1209
        %1331 = vst [vmem:[%s217 + $0xd0] sm:$0xff] %v1211
        %1332 = vst [vmem:[%s217 + $0xd8] sm:$0xff] %v1213
        %1333 = vst [vmem:[%s217 + $0xe0] sm:$0xff] %v1217
        %1334 = vst [vmem:[%s217 + $0xe8] sm:$0xff] %v1219
        %1335 = vst [vmem:[%s217 + $0xf0] sm:$0xff] %v1221
        %1336 = vst [vmem:[%s217 + $0xf8] sm:$0xff] %v1223
        %1337 = vst [vmem:[%s217 + $0x100] sm:$0xff] %v1227
        %1338 = vst [vmem:[%s217 + $0x108] sm:$0xff] %v1229
        %1339 = vst [vmem:[%s217 + $0x110] sm:$0xff] %v1231
        %1340 = vst [vmem:[%s217 + $0x118] sm:$0xff] %v1233
        %1341 = vst [vmem:[%s217 + $0x120] sm:$0xff] %v1237
        %1342 = vst [vmem:[%s217 + $0x128] sm:$0xff] %v1239
        %1343 = vst [vmem:[%s217 + $0x130] sm:$0xff] %v1241
        %1344 = vst [vmem:[%s217 + $0x138] sm:$0xff] %v1243
        %1345 = vst [vmem:[%s217 + $0x140] sm:$0xff] %v1247
        %1346 = vst [vmem:[%s217 + $0x148] sm:$0xff] %v1249
        %1347 = vst [vmem:[%s217 + $0x150] sm:$0xff] %v1251
        %1348 = vst [vmem:[%s217 + $0x158] sm:$0xff] %v1253
        %1349 = vst [vmem:[%s217 + $0x160] sm:$0xff] %v1257
        %1350 = vst [vmem:[%s217 + $0x168] sm:$0xff] %v1259
        %1351 = vst [vmem:[%s217 + $0x170] sm:$0xff] %v1261
        %1352 = vst [vmem:[%s217 + $0x178] sm:$0xff] %v1263
        %1353 = vst [vmem:[%s217 + $0x180] sm:$0xff] %v1267
        %1354 = vst [vmem:[%s217 + $0x188] sm:$0xff] %v1269
        %1355 = vst [vmem:[%s217 + $0x190] sm:$0xff] %v1271
        %1356 = vst [vmem:[%s217 + $0x198] sm:$0xff] %v1273
        %1357 = vst [vmem:[%s217 + $0x1a0] sm:$0xff] %v1277
        %1358 = vst [vmem:[%s217 + $0x1a8] sm:$0xff] %v1279
        %1359 = vst [vmem:[%s217 + $0x1b0] sm:$0xff] %v1281
        %1360 = vst [vmem:[%s217 + $0x1b8] sm:$0xff] %v1283
        %1361 = vst [vmem:[%s217 + $0x1c0] sm:$0xff] %v1287
        %1362 = vst [vmem:[%s217 + $0x1c8] sm:$0xff] %v1289
        %1363 = vst [vmem:[%s217 + $0x1d0] sm:$0xff] %v1291
        %1364 = vst [vmem:[%s217 + $0x1d8] sm:$0xff] %v1293
        %1365 = vst [vmem:[%s217 + $0x1e0] sm:$0xff] %v1297
        %1366 = vst [vmem:[%s217 + $0x1e8] sm:$0xff] %v1299
        %1367 = vst [vmem:[%s217 + $0x1f0] sm:$0xff] %v1301
        %1368 = vst [vmem:[%s217 + $0x1f8] sm:$0xff] %v1303
        %s1369 = sand.u32 %s97, 1
        %s1370 = scalar_lea.sflag [#allocation4], %s1369
        %s1371 = sand.u32 %s97, 1
        %s1372 = smul.addr %s1371, 512
        %s1373 = scalar_lea.vmem [#allocation8], %s1372
        // Predicated region
        $region45: #{tpu_custom_call.1} parent=31 // pred_check
          %p1374 = pneg %p107
        $region46: #{tpu_custom_call.1} parent=31 // pred_check_branch
          %1376 = sbr.rel (%p1374) target = $region48
        $region47: #{tpu_custom_call.1} parent=31 // pred_region
          %s1378 = ssub.s32 8192, 8192
          %1379 = vsyncadd %s1370, %s1378
          %s1380 = smul.addr %s21, 64
          %s1381 = smul.addr %s1380, 128
          %s1382 = scalar_lea.hbm %s3, %s1381
          %s1383 = sshll.u32 %s1373, 4
          %s1384 = int_to_ptr.vmem [resolvable:$true] %s1383
          %1389 = dma.vmem_to_hbm [thread:$0]  %s1384, 8192, %s1382, %s1370, 256, 256, 16
        $region48: #{tpu_custom_call.1} parent=31 // pred_fallthru
          _
      $region32: #{tpu_custom_call.1} parent=5 // pred_fallthru
        _
      %p1390 = scmp.le.s32.totalorder 2, %s16
      // Predicated region
      $region49: #{tpu_custom_call.1} parent=5 // pred_check
        %p1391 = pneg %p1390
      $region50: #{tpu_custom_call.1} parent=5 // pred_check_branch
        %1393 = sbr.rel (%p1391) target = $region52
      $region51: #{tpu_custom_call.1} parent=5 // pred_region
        %s1394 = ssub.s32 %s16, 2
        // Predicated region
        $region53: #{tpu_custom_call.1} parent=51 // pred_check
          %p1395 = pneg %p113
        $region54: #{tpu_custom_call.1} parent=51 // pred_check_branch
          %1397 = sbr.rel (%p1395) target = $region56
        $region55: #{tpu_custom_call.1} parent=51 // pred_region
          %s1398 = sand.u32 %s98, 1
          %s1399 = scalar_lea.sflag [#allocation4], %s1398
          %s1400 = sand.u32 %s98, 1
          %s1401 = smul.addr %s1400, 512
          %s1402 = scalar_lea.vmem [#allocation8], %s1401
          %1403 = dma.done %s1399, 8192
        $region56: #{tpu_custom_call.1} parent=51 // pred_fallthru
          _
      $region52: #{tpu_custom_call.1} parent=5 // pred_fallthru
        _
    $region6: #{tpu_custom_call.1} parent=1 // loop_footer
      %s20 = sadd.s32 1, %s16
    $region7: #{tpu_custom_call.1} parent=1 // loop_footer_branch
      %15 = sbr.rel target = $region3
    $region8: #{tpu_custom_call.1} parent=1 // loop_exit
      _
    %1404 = vsyncpa [#allocation3], 1
    %s1405 = scalar_lea.sflag [#allocation3], 1
    %1406 = vsyncpa %s1405, 1
    %1407 = vsyncpa [#allocation6], 1
    %1408 = vsyncpa [#allocation4], 1
    %s1409 = scalar_lea.sflag [#allocation4], 1
    %1410 = vsyncpa %s1409, 1

</llo_original>
